<compile_context>
chip_gen: v5e
topology: v5e:2x2
jax: 0.10.0
libtpu: 0.0.40
codegen_flags: <defaults>
</compile_context>

<pallas_src>
import functools

import jax
import jax.numpy as jnp
from jax.experimental import pallas as pl
from jax.experimental.pallas import tpu as pltpu


# ---------------------------------------------------------------------------
# Fused forward kernel
# ---------------------------------------------------------------------------
def _planar_vae_kernel(x_ref, eps_ref,
                       w1_ref, b1_ref, w2_ref, b2_ref,      # encoder
                       wh_ref, bh_ref,                      # fused heads (mu|logvar|u|w|b)
                       wd1_ref, bd1_ref, wd2_ref, bd2_ref,  # decoder hidden
                       wo_ref, bo_ref,                      # decoder output
                       xstats_ref, zall_ref, ldj_ref, mu_ref, logvar_ref, h_ref,
                       *, n_flows, latent_dim):
    K = n_flows
    L = latent_dim

    # ---- encoder: x -> h1 -> h ----
    x = x_ref[...]
    h1 = jnp.maximum(
        jnp.dot(x, w1_ref[...], preferred_element_type=jnp.float32) + b1_ref[...], 0.0)
    h = jnp.maximum(
        jnp.dot(h1, w2_ref[...], preferred_element_type=jnp.float32) + b2_ref[...], 0.0)
    h_ref[...] = h

    # ---- fused heads: one matmul for [mu | logvar | amor_u | amor_w | amor_b] ----
    heads = jnp.dot(h, wh_ref[...], preferred_element_type=jnp.float32) + bh_ref[...]
    mu = heads[:, 0:L]
    logvar = heads[:, L:2 * L]
    mu_ref[...] = mu
    logvar_ref[...] = logvar

    # ---- reparameterize (training mode): z0 = mu + exp(0.5*logvar)*eps ----
    z = mu + jnp.exp(0.5 * logvar) * eps_ref[...]
    zall_ref[:, 0:L] = z

    u_off = 2 * L
    w_off = 2 * L + K * L
    b_off = 2 * L + 2 * K * L

    # ---- planar flow chain z0 -> z1 -> ... -> zK (K small & static -> unrolled) ----
    for k in range(K):
        u_k = heads[:, u_off + k * L: u_off + (k + 1) * L]   # (B, L)
        w_k = heads[:, w_off + k * L: w_off + (k + 1) * L]   # (B, L)
        b_k = heads[:, b_off + k: b_off + k + 1]              # (B, 1)

        # invertibility correction: u_hat = u + (m(w^T u) - w^T u) * w / ||w||^2
        uw = jnp.sum(w_k * u_k, axis=-1, keepdims=True)                    # (B, 1)
        softplus_uw = jnp.maximum(uw, 0.0) + jnp.log(1.0 + jnp.exp(-jnp.abs(uw)))
        m_uw = -1.0 + softplus_uw
        w_norm_sq = jnp.sum(w_k * w_k, axis=-1, keepdims=True) + 1e-8
        u_hat = u_k + (m_uw - uw) * w_k / w_norm_sq                        # (B, L)

        # flow step: z' = z + u_hat * tanh(w^T z + b)
        wzb = jnp.sum(w_k * z, axis=-1, keepdims=True) + b_k               # (B, 1)
        t = jnp.tanh(wzb)
        z = z + u_hat * t
        zall_ref[:, (k + 1) * L:(k + 2) * L] = z

        # log|det J| = log|1 + psi^T u_hat|, psi = w * (1 - tanh^2)
        psi_u = jnp.sum(w_k * (1.0 - t * t) * u_hat, axis=-1, keepdims=True)
        ldj_ref[:, k:k + 1] = jnp.log(jnp.abs(1.0 + psi_u) + 1e-8)

    # ---- decoder: z_K -> x_stats (Bernoulli / sigmoid likelihood) ----
    d1 = jnp.maximum(
        jnp.dot(z, wd1_ref[...], preferred_element_type=jnp.float32) + bd1_ref[...], 0.0)
    d2 = jnp.maximum(
        jnp.dot(d1, wd2_ref[...], preferred_element_type=jnp.float32) + bd2_ref[...], 0.0)
    logits = jnp.dot(d2, wo_ref[...], preferred_element_type=jnp.float32) + bo_ref[...]
    xstats_ref[...] = pl.reciprocal(1.0 + jnp.exp(-logits), approx=True)


# ---------------------------------------------------------------------------
# Parameters (deterministic, PyTorch nn.Linear-style uniform init)
# ---------------------------------------------------------------------------
def init_params(key, d_in, hidden, latent, n_flows, d_out):
    def lin(k, fan_in, fan_out):
        k1, k2 = jax.random.split(k)
        s = 1.0 / jnp.sqrt(jnp.float32(fan_in))
        w = jax.random.uniform(k1, (fan_in, fan_out), jnp.float32, -s, s)
        b = jax.random.uniform(k2, (fan_out,), jnp.float32, -s, s)
        return w, b

    ks = jax.random.split(key, 10)
    return {
        "enc_fc1":    lin(ks[0], d_in, hidden),
        "enc_fc2":    lin(ks[1], hidden, hidden),
        "enc_mu":     lin(ks[2], hidden, latent),
        "enc_logvar": lin(ks[3], hidden, latent),
        "amor_u":     lin(ks[4], hidden, n_flows * latent),
        "amor_w":     lin(ks[5], hidden, n_flows * latent),
        "amor_b":     lin(ks[6], hidden, n_flows),
        "dec_fc1":    lin(ks[7], latent, hidden),
        "dec_fc2":    lin(ks[8], hidden, hidden),
        "dec_out":    lin(ks[9], hidden, d_out),
    }


# ---------------------------------------------------------------------------
# PlanarVAE forward (single fused pallas_call; jit-compiled at the call site)
# ---------------------------------------------------------------------------
def planar_vae_forward(params, x, eps, *, n_flows, latent_dim):
    B = x.shape[0]
    K, L = n_flows, latent_dim
    x_flat = x.reshape(B, -1).astype(jnp.float32)
    D_in = x_flat.shape[1]
    H = params["enc_fc1"][0].shape[1]
    D_out = params["dec_out"][0].shape[1]

    # Pad batch to the f32 sublane tile (8) so in-kernel loads/stores are unmasked.
    B_pad = max(8, ((B + 7) // 8) * 8)
    pad = B_pad - B
    x_p = jnp.pad(x_flat, ((0, pad), (0, 0)))
    eps_p = jnp.pad(eps.astype(jnp.float32), ((0, pad), (0, 0)))

    # Fuse the 5 head linears (enc_mu | enc_logvar | amor_u | amor_w | amor_b) into one matmul.
    wh = jnp.concatenate([params["enc_mu"][0], params["enc_logvar"][0],
                          params["amor_u"][0], params["amor_w"][0],
                          params["amor_b"][0]], axis=1)
    bh = jnp.concatenate([params["enc_mu"][1], params["enc_logvar"][1],
                          params["amor_u"][1], params["amor_w"][1],
                          params["amor_b"][1]], axis=0)

    vmem = pl.BlockSpec(memory_space=pltpu.MemorySpace.VMEM)

    outs = pl.pallas_call(
        functools.partial(_planar_vae_kernel, n_flows=K, latent_dim=L),
        out_shape=(
            jax.ShapeDtypeStruct((B_pad, D_out), jnp.float32),        # x_stats (flat)
            jax.ShapeDtypeStruct((B_pad, (K + 1) * L), jnp.float32),  # z_all slab
            jax.ShapeDtypeStruct((B_pad, K), jnp.float32),            # log_det_jacobian
            jax.ShapeDtypeStruct((B_pad, L), jnp.float32),            # mu
            jax.ShapeDtypeStruct((B_pad, L), jnp.float32),            # logvar
            jax.ShapeDtypeStruct((B_pad, H), jnp.float32),            # hidden h
        ),
        in_specs=[vmem] * 14,
        out_specs=(vmem,) * 6,
    )(x_p, eps_p,
      params["enc_fc1"][0], params["enc_fc1"][1].reshape(1, H),
      params["enc_fc2"][0], params["enc_fc2"][1].reshape(1, H),
      wh, bh.reshape(1, -1),
      params["dec_fc1"][0], params["dec_fc1"][1].reshape(1, H),
      params["dec_fc2"][0], params["dec_fc2"][1].reshape(1, H),
      params["dec_out"][0], params["dec_out"][1].reshape(1, D_out))

    x_stats_p, zall_p, ldj_p, mu_p, logvar_p, h_p = outs

    x_stats = x_stats_p[:B].reshape(x.shape)
    zall = zall_p[:B]
    log_det_jacobian = ldj_p[:B]
    mu, logvar, hidden = mu_p[:B], logvar_p[:B], h_p[:B]

    z_flow = [zall[:, k * L:(k + 1) * L] for k in range(K + 1)]
    latent_sample = z_flow[0]                                  # z_0, as in the PyTorch module
    latent_stats = {"continuous": (mu, logvar), "hidden": hidden}
    flow_output = {"log_det_jacobian": log_det_jacobian, "z_flow": z_flow}
    return x_stats, latent_sample, latent_stats, flow_output


# ---------------------------------------------------------------------------
if __name__ == "__main__":
    B, C, H_IMG, W_IMG = 2, 4, 16, 16       # input_dim = (4, 16, 16) -> output_dim = 1024
    HIDDEN, LATENT, N_FLOWS = 32, 8, 4      # hidden_dim, latent_spec['continuous'], flow_steps

    key = jax.random.PRNGKey(0)
    k_params, k_x, k_eps = jax.random.split(key, 3)

    params = init_params(k_params, C * H_IMG * W_IMG, HIDDEN, LATENT, N_FLOWS,
                         C * H_IMG * W_IMG)
    x = jax.random.uniform(k_x, (B, C, H_IMG, W_IMG), jnp.float32)
    eps = jax.random.normal(k_eps, (B, LATENT), jnp.float32)   # reparameterization noise

    fwd = jax.jit(functools.partial(planar_vae_forward, n_flows=N_FLOWS, latent_dim=LATENT))
    out = fwd(params, x, eps)
    out = jax.block_until_ready(out)

    x_stats, latent_sample, latent_stats, flow_output = out
    assert x_stats.shape == (B, C, H_IMG, W_IMG)
    assert latent_sample.shape == (B, LATENT)
    assert latent_stats["continuous"][0].shape == (B, LATENT)
    assert latent_stats["continuous"][1].shape == (B, LATENT)
    assert flow_output["log_det_jacobian"].shape == (B, N_FLOWS)
    assert len(flow_output["z_flow"]) == N_FLOWS + 1
    assert all(z.shape == (B, LATENT) for z in flow_output["z_flow"])
    assert bool(jnp.all(jnp.isfinite(x_stats)))
    assert bool(jnp.all(jnp.isfinite(flow_output["log_det_jacobian"])))
    print("KERNEL_OK")
</pallas_src>

<mosaic_0001>
module attributes {stable_mosaic.version = 11 : i64} {
  func.func @_planar_vae_kernel(%arg0: memref<8x1024xf32, #tpu.memory_space<vmem>>, %arg1: memref<8x8xf32, #tpu.memory_space<vmem>>, %arg2: memref<1024x32xf32, #tpu.memory_space<vmem>>, %arg3: memref<1x32xf32, #tpu.memory_space<vmem>>, %arg4: memref<32x32xf32, #tpu.memory_space<vmem>>, %arg5: memref<1x32xf32, #tpu.memory_space<vmem>>, %arg6: memref<32x84xf32, #tpu.memory_space<vmem>>, %arg7: memref<1x84xf32, #tpu.memory_space<vmem>>, %arg8: memref<8x32xf32, #tpu.memory_space<vmem>>, %arg9: memref<1x32xf32, #tpu.memory_space<vmem>>, %arg10: memref<32x32xf32, #tpu.memory_space<vmem>>, %arg11: memref<1x32xf32, #tpu.memory_space<vmem>>, %arg12: memref<32x1024xf32, #tpu.memory_space<vmem>>, %arg13: memref<1x1024xf32, #tpu.memory_space<vmem>>, %arg14: memref<8x1024xf32, #tpu.memory_space<vmem>>, %arg15: memref<8x40xf32, #tpu.memory_space<vmem>>, %arg16: memref<8x4xf32, #tpu.memory_space<vmem>>, %arg17: memref<8x8xf32, #tpu.memory_space<vmem>>, %arg18: memref<8x8xf32, #tpu.memory_space<vmem>>, %arg19: memref<8x32xf32, #tpu.memory_space<vmem>>) attributes {dimension_semantics = [], scalar_prefetch = 0 : i64, scratch_operands = 0 : i64, tpu.core_type = #tpu.core_type<tc>} {
    %c0 = arith.constant 0 : index
    %c0_0 = arith.constant 0 : index
    %0 = vector.load %arg0[%c0, %c0_0] : memref<8x1024xf32, #tpu.memory_space<vmem>>, vector<8x1024xf32>
    %c0_1 = arith.constant 0 : index
    %c0_2 = arith.constant 0 : index
    %1 = vector.load %arg2[%c0_1, %c0_2] : memref<1024x32xf32, #tpu.memory_space<vmem>>, vector<1024x32xf32>
    %cst = arith.constant dense<0.000000e+00> : vector<8x32xf32>
    %2 = tpu.matmul %0, %1, %cst {dimension_numbers = #tpu.dot_dimension_numbers<[1], [0], [0], [1], [0, 0, 1, 1], [], []>} : vector<8x1024xf32>, vector<1024x32xf32>, vector<8x32xf32> -> vector<8x32xf32>
    %c0_3 = arith.constant 0 : index
    %c0_4 = arith.constant 0 : index
    %3 = vector.load %arg3[%c0_3, %c0_4] : memref<1x32xf32, #tpu.memory_space<vmem>>, vector<1x32xf32>
    %4 = vector.broadcast %3 : vector<1x32xf32> to vector<8x32xf32>
    %5 = arith.addf %2, %4 : vector<8x32xf32>
    %cst_5 = arith.constant 0.000000e+00 : f32
    %6 = vector.broadcast %cst_5 : f32 to vector<8x32xf32>
    %7 = arith.maximumf %5, %6 : vector<8x32xf32>
    %c0_6 = arith.constant 0 : index
    %c0_7 = arith.constant 0 : index
    %8 = vector.load %arg4[%c0_6, %c0_7] : memref<32x32xf32, #tpu.memory_space<vmem>>, vector<32x32xf32>
    %cst_8 = arith.constant dense<0.000000e+00> : vector<8x32xf32>
    %9 = tpu.matmul %7, %8, %cst_8 {dimension_numbers = #tpu.dot_dimension_numbers<[1], [0], [0], [1], [0, 0, 1, 1], [], []>} : vector<8x32xf32>, vector<32x32xf32>, vector<8x32xf32> -> vector<8x32xf32>
    %c0_9 = arith.constant 0 : index
    %c0_10 = arith.constant 0 : index
    %10 = vector.load %arg5[%c0_9, %c0_10] : memref<1x32xf32, #tpu.memory_space<vmem>>, vector<1x32xf32>
    %11 = vector.broadcast %10 : vector<1x32xf32> to vector<8x32xf32>
    %12 = arith.addf %9, %11 : vector<8x32xf32>
    %cst_11 = arith.constant 0.000000e+00 : f32
    %13 = vector.broadcast %cst_11 : f32 to vector<8x32xf32>
    %14 = arith.maximumf %12, %13 : vector<8x32xf32>
    %c0_12 = arith.constant 0 : index
    %c0_13 = arith.constant 0 : index
    %15 = vector.load %arg19[%c0_12, %c0_13] : memref<8x32xf32, #tpu.memory_space<vmem>>, vector<8x32xf32>
    tpu.vector_store %arg19[%c0_12, %c0_13], %14 {strides = array<i32>} : memref<8x32xf32, #tpu.memory_space<vmem>>, vector<8x32xf32>,
    %c0_14 = arith.constant 0 : index
    %c0_15 = arith.constant 0 : index
    %16 = vector.load %arg6[%c0_14, %c0_15] : memref<32x84xf32, #tpu.memory_space<vmem>>, vector<32x84xf32>
    %cst_16 = arith.constant dense<0.000000e+00> : vector<8x84xf32>
    %17 = tpu.matmul %14, %16, %cst_16 {dimension_numbers = #tpu.dot_dimension_numbers<[1], [0], [0], [1], [0, 0, 1, 1], [], []>} : vector<8x32xf32>, vector<32x84xf32>, vector<8x84xf32> -> vector<8x84xf32>
    %c0_17 = arith.constant 0 : index
    %c0_18 = arith.constant 0 : index
    %18 = vector.load %arg7[%c0_17, %c0_18] : memref<1x84xf32, #tpu.memory_space<vmem>>, vector<1x84xf32>
    %19 = vector.broadcast %18 : vector<1x84xf32> to vector<8x84xf32>
    %20 = arith.addf %17, %19 : vector<8x84xf32>
    %21 = vector.extract_strided_slice %20 {offsets = [0, 0], sizes = [8, 8], strides = [1, 1]} : vector<8x84xf32> to vector<8x8xf32>
    %22 = vector.extract_strided_slice %20 {offsets = [0, 8], sizes = [8, 8], strides = [1, 1]} : vector<8x84xf32> to vector<8x8xf32>
    %c0_19 = arith.constant 0 : index
    %c0_20 = arith.constant 0 : index
    %23 = vector.load %arg17[%c0_19, %c0_20] : memref<8x8xf32, #tpu.memory_space<vmem>>, vector<8x8xf32>
    tpu.vector_store %arg17[%c0_19, %c0_20], %21 {strides = array<i32>} : memref<8x8xf32, #tpu.memory_space<vmem>>, vector<8x8xf32>,
    %c0_21 = arith.constant 0 : index
    %c0_22 = arith.constant 0 : index
    %24 = vector.load %arg18[%c0_21, %c0_22] : memref<8x8xf32, #tpu.memory_space<vmem>>, vector<8x8xf32>
    tpu.vector_store %arg18[%c0_21, %c0_22], %22 {strides = array<i32>} : memref<8x8xf32, #tpu.memory_space<vmem>>, vector<8x8xf32>,
    %cst_23 = arith.constant 5.000000e-01 : f32
    %25 = vector.broadcast %cst_23 : f32 to vector<8x8xf32>
    %26 = arith.mulf %25, %22 : vector<8x8xf32>
    %27 = math.exp %26 : vector<8x8xf32>
    %c0_24 = arith.constant 0 : index
    %c0_25 = arith.constant 0 : index
    %28 = vector.load %arg1[%c0_24, %c0_25] : memref<8x8xf32, #tpu.memory_space<vmem>>, vector<8x8xf32>
    %29 = arith.mulf %27, %28 : vector<8x8xf32>
    %30 = arith.addf %21, %29 : vector<8x8xf32>
    %c0_26 = arith.constant 0 : index
    %c0_27 = arith.constant 0 : index
    %31 = vector.load %arg15[%c0_26, %c0_27] : memref<8x40xf32, #tpu.memory_space<vmem>>, vector<8x8xf32>
    tpu.vector_store %arg15[%c0_26, %c0_27], %30 {strides = array<i32>} : memref<8x40xf32, #tpu.memory_space<vmem>>, vector<8x8xf32>,
    %32 = vector.extract_strided_slice %20 {offsets = [0, 16], sizes = [8, 8], strides = [1, 1]} : vector<8x84xf32> to vector<8x8xf32>
    %33 = vector.extract_strided_slice %20 {offsets = [0, 48], sizes = [8, 8], strides = [1, 1]} : vector<8x84xf32> to vector<8x8xf32>
    %34 = vector.extract_strided_slice %20 {offsets = [0, 80], sizes = [8, 1], strides = [1, 1]} : vector<8x84xf32> to vector<8x1xf32>
    %35 = arith.mulf %33, %32 : vector<8x8xf32>
    %cst_28 = arith.constant dense<0.000000e+00> : vector<8xf32>
    %36 = vector.multi_reduction <add>, %35, %cst_28 [1] : vector<8x8xf32> to vector<8xf32>
    %37 = vector.shape_cast %36 : vector<8xf32> to vector<8x1xf32>
    %cst_29 = arith.constant 0.000000e+00 : f32
    %38 = vector.broadcast %cst_29 : f32 to vector<8x1xf32>
    %39 = arith.maximumf %37, %38 : vector<8x1xf32>
    %40 = math.absf %37 : vector<8x1xf32>
    %cst_30 = arith.constant 0.000000e+00 : f32
    %41 = vector.broadcast %cst_30 : f32 to vector<8x1xf32>
    %42 = arith.subf %41, %40 : vector<8x1xf32>
    %43 = math.exp %42 : vector<8x1xf32>
    %cst_31 = arith.constant 1.000000e+00 : f32
    %44 = vector.broadcast %cst_31 : f32 to vector<8x1xf32>
    %45 = arith.addf %44, %43 : vector<8x1xf32>
    %46 = math.log %45 : vector<8x1xf32>
    %47 = arith.addf %39, %46 : vector<8x1xf32>
    %cst_32 = arith.constant -1.000000e+00 : f32
    %48 = vector.broadcast %cst_32 : f32 to vector<8x1xf32>
    %49 = arith.addf %48, %47 : vector<8x1xf32>
    %50 = arith.mulf %33, %33 : vector<8x8xf32>
    %cst_33 = arith.constant dense<0.000000e+00> : vector<8xf32>
    %51 = vector.multi_reduction <add>, %50, %cst_33 [1] : vector<8x8xf32> to vector<8xf32>
    %52 = vector.shape_cast %51 : vector<8xf32> to vector<8x1xf32>
    %cst_34 = arith.constant 9.99999993E-9 : f32
    %53 = vector.broadcast %cst_34 : f32 to vector<8x1xf32>
    %54 = arith.addf %52, %53 : vector<8x1xf32>
    %55 = arith.subf %49, %37 : vector<8x1xf32>
    %56 = vector.broadcast %55 : vector<8x1xf32> to vector<8x8xf32>
    %57 = arith.mulf %56, %33 : vector<8x8xf32>
    %58 = vector.broadcast %54 : vector<8x1xf32> to vector<8x8xf32>
    %59 = arith.divf %57, %58 : vector<8x8xf32>
    %60 = arith.addf %32, %59 : vector<8x8xf32>
    %61 = arith.mulf %33, %30 : vector<8x8xf32>
    %cst_35 = arith.constant dense<0.000000e+00> : vector<8xf32>
    %62 = vector.multi_reduction <add>, %61, %cst_35 [1] : vector<8x8xf32> to vector<8xf32>
    %63 = vector.shape_cast %62 : vector<8xf32> to vector<8x1xf32>
    %64 = arith.addf %63, %34 : vector<8x1xf32>
    %65 = math.tanh %64 : vector<8x1xf32>
    %66 = vector.broadcast %65 : vector<8x1xf32> to vector<8x8xf32>
    %67 = arith.mulf %60, %66 : vector<8x8xf32>
    %68 = arith.addf %30, %67 : vector<8x8xf32>
    %c0_36 = arith.constant 0 : index
    %c8 = arith.constant 8 : index
    %69 = vector.load %arg15[%c0_36, %c8] : memref<8x40xf32, #tpu.memory_space<vmem>>, vector<8x8xf32>
    tpu.vector_store %arg15[%c0_36, %c8], %68 {strides = array<i32>} : memref<8x40xf32, #tpu.memory_space<vmem>>, vector<8x8xf32>,
    %70 = arith.mulf %65, %65 : vector<8x1xf32>
    %cst_37 = arith.constant 1.000000e+00 : f32
    %71 = vector.broadcast %cst_37 : f32 to vector<8x1xf32>
    %72 = arith.subf %71, %70 : vector<8x1xf32>
    %73 = vector.broadcast %72 : vector<8x1xf32> to vector<8x8xf32>
    %74 = arith.mulf %33, %73 : vector<8x8xf32>
    %75 = arith.mulf %74, %60 : vector<8x8xf32>
    %cst_38 = arith.constant dense<0.000000e+00> : vector<8xf32>
    %76 = vector.multi_reduction <add>, %75, %cst_38 [1] : vector<8x8xf32> to vector<8xf32>
    %77 = vector.shape_cast %76 : vector<8xf32> to vector<8x1xf32>
    %cst_39 = arith.constant 1.000000e+00 : f32
    %78 = vector.broadcast %cst_39 : f32 to vector<8x1xf32>
    %79 = arith.addf %78, %77 : vector<8x1xf32>
    %80 = math.absf %79 : vector<8x1xf32>
    %cst_40 = arith.constant 9.99999993E-9 : f32
    %81 = vector.broadcast %cst_40 : f32 to vector<8x1xf32>
    %82 = arith.addf %80, %81 : vector<8x1xf32>
    %83 = math.log %82 : vector<8x1xf32>
    %c0_41 = arith.constant 0 : index
    %c0_42 = arith.constant 0 : index
    %84 = vector.load %arg16[%c0_41, %c0_42] : memref<8x4xf32, #tpu.memory_space<vmem>>, vector<8x1xf32>
    tpu.vector_store %arg16[%c0_41, %c0_42], %83 {strides = array<i32>} : memref<8x4xf32, #tpu.memory_space<vmem>>, vector<8x1xf32>,
    %85 = vector.extract_strided_slice %20 {offsets = [0, 24], sizes = [8, 8], strides = [1, 1]} : vector<8x84xf32> to vector<8x8xf32>
    %86 = vector.extract_strided_slice %20 {offsets = [0, 56], sizes = [8, 8], strides = [1, 1]} : vector<8x84xf32> to vector<8x8xf32>
    %87 = vector.extract_strided_slice %20 {offsets = [0, 81], sizes = [8, 1], strides = [1, 1]} : vector<8x84xf32> to vector<8x1xf32>
    %88 = arith.mulf %86, %85 : vector<8x8xf32>
    %cst_43 = arith.constant dense<0.000000e+00> : vector<8xf32>
    %89 = vector.multi_reduction <add>, %88, %cst_43 [1] : vector<8x8xf32> to vector<8xf32>
    %90 = vector.shape_cast %89 : vector<8xf32> to vector<8x1xf32>
    %cst_44 = arith.constant 0.000000e+00 : f32
    %91 = vector.broadcast %cst_44 : f32 to vector<8x1xf32>
    %92 = arith.maximumf %90, %91 : vector<8x1xf32>
    %93 = math.absf %90 : vector<8x1xf32>
    %cst_45 = arith.constant 0.000000e+00 : f32
    %94 = vector.broadcast %cst_45 : f32 to vector<8x1xf32>
    %95 = arith.subf %94, %93 : vector<8x1xf32>
    %96 = math.exp %95 : vector<8x1xf32>
    %cst_46 = arith.constant 1.000000e+00 : f32
    %97 = vector.broadcast %cst_46 : f32 to vector<8x1xf32>
    %98 = arith.addf %97, %96 : vector<8x1xf32>
    %99 = math.log %98 : vector<8x1xf32>
    %100 = arith.addf %92, %99 : vector<8x1xf32>
    %cst_47 = arith.constant -1.000000e+00 : f32
    %101 = vector.broadcast %cst_47 : f32 to vector<8x1xf32>
    %102 = arith.addf %101, %100 : vector<8x1xf32>
    %103 = arith.mulf %86, %86 : vector<8x8xf32>
    %cst_48 = arith.constant dense<0.000000e+00> : vector<8xf32>
    %104 = vector.multi_reduction <add>, %103, %cst_48 [1] : vector<8x8xf32> to vector<8xf32>
    %105 = vector.shape_cast %104 : vector<8xf32> to vector<8x1xf32>
    %cst_49 = arith.constant 9.99999993E-9 : f32
    %106 = vector.broadcast %cst_49 : f32 to vector<8x1xf32>
    %107 = arith.addf %105, %106 : vector<8x1xf32>
    %108 = arith.subf %102, %90 : vector<8x1xf32>
    %109 = vector.broadcast %108 : vector<8x1xf32> to vector<8x8xf32>
    %110 = arith.mulf %109, %86 : vector<8x8xf32>
    %111 = vector.broadcast %107 : vector<8x1xf32> to vector<8x8xf32>
    %112 = arith.divf %110, %111 : vector<8x8xf32>
    %113 = arith.addf %85, %112 : vector<8x8xf32>
    %114 = arith.mulf %86, %68 : vector<8x8xf32>
    %cst_50 = arith.constant dense<0.000000e+00> : vector<8xf32>
    %115 = vector.multi_reduction <add>, %114, %cst_50 [1] : vector<8x8xf32> to vector<8xf32>
    %116 = vector.shape_cast %115 : vector<8xf32> to vector<8x1xf32>
    %117 = arith.addf %116, %87 : vector<8x1xf32>
    %118 = math.tanh %117 : vector<8x1xf32>
    %119 = vector.broadcast %118 : vector<8x1xf32> to vector<8x8xf32>
    %120 = arith.mulf %113, %119 : vector<8x8xf32>
    %121 = arith.addf %68, %120 : vector<8x8xf32>
    %c0_51 = arith.constant 0 : index
    %c16 = arith.constant 16 : index
    %122 = vector.load %arg15[%c0_51, %c16] : memref<8x40xf32, #tpu.memory_space<vmem>>, vector<8x8xf32>
    tpu.vector_store %arg15[%c0_51, %c16], %121 {strides = array<i32>} : memref<8x40xf32, #tpu.memory_space<vmem>>, vector<8x8xf32>,
    %123 = arith.mulf %118, %118 : vector<8x1xf32>
    %cst_52 = arith.constant 1.000000e+00 : f32
    %124 = vector.broadcast %cst_52 : f32 to vector<8x1xf32>
    %125 = arith.subf %124, %123 : vector<8x1xf32>
    %126 = vector.broadcast %125 : vector<8x1xf32> to vector<8x8xf32>
    %127 = arith.mulf %86, %126 : vector<8x8xf32>
    %128 = arith.mulf %127, %113 : vector<8x8xf32>
    %cst_53 = arith.constant dense<0.000000e+00> : vector<8xf32>
    %129 = vector.multi_reduction <add>, %128, %cst_53 [1] : vector<8x8xf32> to vector<8xf32>
    %130 = vector.shape_cast %129 : vector<8xf32> to vector<8x1xf32>
    %cst_54 = arith.constant 1.000000e+00 : f32
    %131 = vector.broadcast %cst_54 : f32 to vector<8x1xf32>
    %132 = arith.addf %131, %130 : vector<8x1xf32>
    %133 = math.absf %132 : vector<8x1xf32>
    %cst_55 = arith.constant 9.99999993E-9 : f32
    %134 = vector.broadcast %cst_55 : f32 to vector<8x1xf32>
    %135 = arith.addf %133, %134 : vector<8x1xf32>
    %136 = math.log %135 : vector<8x1xf32>
    %c0_56 = arith.constant 0 : index
    %c1 = arith.constant 1 : index
    %137 = vector.load %arg16[%c0_56, %c1] : memref<8x4xf32, #tpu.memory_space<vmem>>, vector<8x1xf32>
    tpu.vector_store %arg16[%c0_56, %c1], %136 {strides = array<i32>} : memref<8x4xf32, #tpu.memory_space<vmem>>, vector<8x1xf32>,
    %138 = vector.extract_strided_slice %20 {offsets = [0, 32], sizes = [8, 8], strides = [1, 1]} : vector<8x84xf32> to vector<8x8xf32>
    %139 = vector.extract_strided_slice %20 {offsets = [0, 64], sizes = [8, 8], strides = [1, 1]} : vector<8x84xf32> to vector<8x8xf32>
    %140 = vector.extract_strided_slice %20 {offsets = [0, 82], sizes = [8, 1], strides = [1, 1]} : vector<8x84xf32> to vector<8x1xf32>
    %141 = arith.mulf %139, %138 : vector<8x8xf32>
    %cst_57 = arith.constant dense<0.000000e+00> : vector<8xf32>
    %142 = vector.multi_reduction <add>, %141, %cst_57 [1] : vector<8x8xf32> to vector<8xf32>
    %143 = vector.shape_cast %142 : vector<8xf32> to vector<8x1xf32>
    %cst_58 = arith.constant 0.000000e+00 : f32
    %144 = vector.broadcast %cst_58 : f32 to vector<8x1xf32>
    %145 = arith.maximumf %143, %144 : vector<8x1xf32>
    %146 = math.absf %143 : vector<8x1xf32>
    %cst_59 = arith.constant 0.000000e+00 : f32
    %147 = vector.broadcast %cst_59 : f32 to vector<8x1xf32>
    %148 = arith.subf %147, %146 : vector<8x1xf32>
    %149 = math.exp %148 : vector<8x1xf32>
    %cst_60 = arith.constant 1.000000e+00 : f32
    %150 = vector.broadcast %cst_60 : f32 to vector<8x1xf32>
    %151 = arith.addf %150, %149 : vector<8x1xf32>
    %152 = math.log %151 : vector<8x1xf32>
    %153 = arith.addf %145, %152 : vector<8x1xf32>
    %cst_61 = arith.constant -1.000000e+00 : f32
    %154 = vector.broadcast %cst_61 : f32 to vector<8x1xf32>
    %155 = arith.addf %154, %153 : vector<8x1xf32>
    %156 = arith.mulf %139, %139 : vector<8x8xf32>
    %cst_62 = arith.constant dense<0.000000e+00> : vector<8xf32>
    %157 = vector.multi_reduction <add>, %156, %cst_62 [1] : vector<8x8xf32> to vector<8xf32>
    %158 = vector.shape_cast %157 : vector<8xf32> to vector<8x1xf32>
    %cst_63 = arith.constant 9.99999993E-9 : f32
    %159 = vector.broadcast %cst_63 : f32 to vector<8x1xf32>
    %160 = arith.addf %158, %159 : vector<8x1xf32>
    %161 = arith.subf %155, %143 : vector<8x1xf32>
    %162 = vector.broadcast %161 : vector<8x1xf32> to vector<8x8xf32>
    %163 = arith.mulf %162, %139 : vector<8x8xf32>
    %164 = vector.broadcast %160 : vector<8x1xf32> to vector<8x8xf32>
    %165 = arith.divf %163, %164 : vector<8x8xf32>
    %166 = arith.addf %138, %165 : vector<8x8xf32>
    %167 = arith.mulf %139, %121 : vector<8x8xf32>
    %cst_64 = arith.constant dense<0.000000e+00> : vector<8xf32>
    %168 = vector.multi_reduction <add>, %167, %cst_64 [1] : vector<8x8xf32> to vector<8xf32>
    %169 = vector.shape_cast %168 : vector<8xf32> to vector<8x1xf32>
    %170 = arith.addf %169, %140 : vector<8x1xf32>
    %171 = math.tanh %170 : vector<8x1xf32>
    %172 = vector.broadcast %171 : vector<8x1xf32> to vector<8x8xf32>
    %173 = arith.mulf %166, %172 : vector<8x8xf32>
    %174 = arith.addf %121, %173 : vector<8x8xf32>
    %c0_65 = arith.constant 0 : index
    %c24 = arith.constant 24 : index
    %175 = vector.load %arg15[%c0_65, %c24] : memref<8x40xf32, #tpu.memory_space<vmem>>, vector<8x8xf32>
    tpu.vector_store %arg15[%c0_65, %c24], %174 {strides = array<i32>} : memref<8x40xf32, #tpu.memory_space<vmem>>, vector<8x8xf32>,
    %176 = arith.mulf %171, %171 : vector<8x1xf32>
    %cst_66 = arith.constant 1.000000e+00 : f32
    %177 = vector.broadcast %cst_66 : f32 to vector<8x1xf32>
    %178 = arith.subf %177, %176 : vector<8x1xf32>
    %179 = vector.broadcast %178 : vector<8x1xf32> to vector<8x8xf32>
    %180 = arith.mulf %139, %179 : vector<8x8xf32>
    %181 = arith.mulf %180, %166 : vector<8x8xf32>
    %cst_67 = arith.constant dense<0.000000e+00> : vector<8xf32>
    %182 = vector.multi_reduction <add>, %181, %cst_67 [1] : vector<8x8xf32> to vector<8xf32>
    %183 = vector.shape_cast %182 : vector<8xf32> to vector<8x1xf32>
    %cst_68 = arith.constant 1.000000e+00 : f32
    %184 = vector.broadcast %cst_68 : f32 to vector<8x1xf32>
    %185 = arith.addf %184, %183 : vector<8x1xf32>
    %186 = math.absf %185 : vector<8x1xf32>
    %cst_69 = arith.constant 9.99999993E-9 : f32
    %187 = vector.broadcast %cst_69 : f32 to vector<8x1xf32>
    %188 = arith.addf %186, %187 : vector<8x1xf32>
    %189 = math.log %188 : vector<8x1xf32>
    %c0_70 = arith.constant 0 : index
    %c2 = arith.constant 2 : index
    %190 = vector.load %arg16[%c0_70, %c2] : memref<8x4xf32, #tpu.memory_space<vmem>>, vector<8x1xf32>
    tpu.vector_store %arg16[%c0_70, %c2], %189 {strides = array<i32>} : memref<8x4xf32, #tpu.memory_space<vmem>>, vector<8x1xf32>,
    %191 = vector.extract_strided_slice %20 {offsets = [0, 40], sizes = [8, 8], strides = [1, 1]} : vector<8x84xf32> to vector<8x8xf32>
    %192 = vector.extract_strided_slice %20 {offsets = [0, 72], sizes = [8, 8], strides = [1, 1]} : vector<8x84xf32> to vector<8x8xf32>
    %193 = vector.extract_strided_slice %20 {offsets = [0, 83], sizes = [8, 1], strides = [1, 1]} : vector<8x84xf32> to vector<8x1xf32>
    %194 = arith.mulf %192, %191 : vector<8x8xf32>
    %cst_71 = arith.constant dense<0.000000e+00> : vector<8xf32>
    %195 = vector.multi_reduction <add>, %194, %cst_71 [1] : vector<8x8xf32> to vector<8xf32>
    %196 = vector.shape_cast %195 : vector<8xf32> to vector<8x1xf32>
    %cst_72 = arith.constant 0.000000e+00 : f32
    %197 = vector.broadcast %cst_72 : f32 to vector<8x1xf32>
    %198 = arith.maximumf %196, %197 : vector<8x1xf32>
    %199 = math.absf %196 : vector<8x1xf32>
    %cst_73 = arith.constant 0.000000e+00 : f32
    %200 = vector.broadcast %cst_73 : f32 to vector<8x1xf32>
    %201 = arith.subf %200, %199 : vector<8x1xf32>
    %202 = math.exp %201 : vector<8x1xf32>
    %cst_74 = arith.constant 1.000000e+00 : f32
    %203 = vector.broadcast %cst_74 : f32 to vector<8x1xf32>
    %204 = arith.addf %203, %202 : vector<8x1xf32>
    %205 = math.log %204 : vector<8x1xf32>
    %206 = arith.addf %198, %205 : vector<8x1xf32>
    %cst_75 = arith.constant -1.000000e+00 : f32
    %207 = vector.broadcast %cst_75 : f32 to vector<8x1xf32>
    %208 = arith.addf %207, %206 : vector<8x1xf32>
    %209 = arith.mulf %192, %192 : vector<8x8xf32>
    %cst_76 = arith.constant dense<0.000000e+00> : vector<8xf32>
    %210 = vector.multi_reduction <add>, %209, %cst_76 [1] : vector<8x8xf32> to vector<8xf32>
    %211 = vector.shape_cast %210 : vector<8xf32> to vector<8x1xf32>
    %cst_77 = arith.constant 9.99999993E-9 : f32
    %212 = vector.broadcast %cst_77 : f32 to vector<8x1xf32>
    %213 = arith.addf %211, %212 : vector<8x1xf32>
    %214 = arith.subf %208, %196 : vector<8x1xf32>
    %215 = vector.broadcast %214 : vector<8x1xf32> to vector<8x8xf32>
    %216 = arith.mulf %215, %192 : vector<8x8xf32>
    %217 = vector.broadcast %213 : vector<8x1xf32> to vector<8x8xf32>
    %218 = arith.divf %216, %217 : vector<8x8xf32>
    %219 = arith.addf %191, %218 : vector<8x8xf32>
    %220 = arith.mulf %192, %174 : vector<8x8xf32>
    %cst_78 = arith.constant dense<0.000000e+00> : vector<8xf32>
    %221 = vector.multi_reduction <add>, %220, %cst_78 [1] : vector<8x8xf32> to vector<8xf32>
    %222 = vector.shape_cast %221 : vector<8xf32> to vector<8x1xf32>
    %223 = arith.addf %222, %193 : vector<8x1xf32>
    %224 = math.tanh %223 : vector<8x1xf32>
    %225 = vector.broadcast %224 : vector<8x1xf32> to vector<8x8xf32>
    %226 = arith.mulf %219, %225 : vector<8x8xf32>
    %227 = arith.addf %174, %226 : vector<8x8xf32>
    %c0_79 = arith.constant 0 : index
    %c32 = arith.constant 32 : index
    %228 = vector.load %arg15[%c0_79, %c32] : memref<8x40xf32, #tpu.memory_space<vmem>>, vector<8x8xf32>
    tpu.vector_store %arg15[%c0_79, %c32], %227 {strides = array<i32>} : memref<8x40xf32, #tpu.memory_space<vmem>>, vector<8x8xf32>,
    %229 = arith.mulf %224, %224 : vector<8x1xf32>
    %cst_80 = arith.constant 1.000000e+00 : f32
    %230 = vector.broadcast %cst_80 : f32 to vector<8x1xf32>
    %231 = arith.subf %230, %229 : vector<8x1xf32>
    %232 = vector.broadcast %231 : vector<8x1xf32> to vector<8x8xf32>
    %233 = arith.mulf %192, %232 : vector<8x8xf32>
    %234 = arith.mulf %233, %219 : vector<8x8xf32>
    %cst_81 = arith.constant dense<0.000000e+00> : vector<8xf32>
    %235 = vector.multi_reduction <add>, %234, %cst_81 [1] : vector<8x8xf32> to vector<8xf32>
    %236 = vector.shape_cast %235 : vector<8xf32> to vector<8x1xf32>
    %cst_82 = arith.constant 1.000000e+00 : f32
    %237 = vector.broadcast %cst_82 : f32 to vector<8x1xf32>
    %238 = arith.addf %237, %236 : vector<8x1xf32>
    %239 = math.absf %238 : vector<8x1xf32>
    %cst_83 = arith.constant 9.99999993E-9 : f32
    %240 = vector.broadcast %cst_83 : f32 to vector<8x1xf32>
    %241 = arith.addf %239, %240 : vector<8x1xf32>
    %242 = math.log %241 : vector<8x1xf32>
    %c0_84 = arith.constant 0 : index
    %c3 = arith.constant 3 : index
    %243 = vector.load %arg16[%c0_84, %c3] : memref<8x4xf32, #tpu.memory_space<vmem>>, vector<8x1xf32>
    tpu.vector_store %arg16[%c0_84, %c3], %242 {strides = array<i32>} : memref<8x4xf32, #tpu.memory_space<vmem>>, vector<8x1xf32>,
    %c0_85 = arith.constant 0 : index
    %c0_86 = arith.constant 0 : index
    %244 = vector.load %arg8[%c0_85, %c0_86] : memref<8x32xf32, #tpu.memory_space<vmem>>, vector<8x32xf32>
    %cst_87 = arith.constant dense<0.000000e+00> : vector<8x32xf32>
    %245 = tpu.matmul %227, %244, %cst_87 {dimension_numbers = #tpu.dot_dimension_numbers<[1], [0], [0], [1], [0, 0, 1, 1], [], []>} : vector<8x8xf32>, vector<8x32xf32>, vector<8x32xf32> -> vector<8x32xf32>
    %c0_88 = arith.constant 0 : index
    %c0_89 = arith.constant 0 : index
    %246 = vector.load %arg9[%c0_88, %c0_89] : memref<1x32xf32, #tpu.memory_space<vmem>>, vector<1x32xf32>
    %247 = vector.broadcast %246 : vector<1x32xf32> to vector<8x32xf32>
    %248 = arith.addf %245, %247 : vector<8x32xf32>
    %cst_90 = arith.constant 0.000000e+00 : f32
    %249 = vector.broadcast %cst_90 : f32 to vector<8x32xf32>
    %250 = arith.maximumf %248, %249 : vector<8x32xf32>
    %c0_91 = arith.constant 0 : index
    %c0_92 = arith.constant 0 : index
    %251 = vector.load %arg10[%c0_91, %c0_92] : memref<32x32xf32, #tpu.memory_space<vmem>>, vector<32x32xf32>
    %cst_93 = arith.constant dense<0.000000e+00> : vector<8x32xf32>
    %252 = tpu.matmul %250, %251, %cst_93 {dimension_numbers = #tpu.dot_dimension_numbers<[1], [0], [0], [1], [0, 0, 1, 1], [], []>} : vector<8x32xf32>, vector<32x32xf32>, vector<8x32xf32> -> vector<8x32xf32>
    %c0_94 = arith.constant 0 : index
    %c0_95 = arith.constant 0 : index
    %253 = vector.load %arg11[%c0_94, %c0_95] : memref<1x32xf32, #tpu.memory_space<vmem>>, vector<1x32xf32>
    %254 = vector.broadcast %253 : vector<1x32xf32> to vector<8x32xf32>
    %255 = arith.addf %252, %254 : vector<8x32xf32>
    %cst_96 = arith.constant 0.000000e+00 : f32
    %256 = vector.broadcast %cst_96 : f32 to vector<8x32xf32>
    %257 = arith.maximumf %255, %256 : vector<8x32xf32>
    %c0_97 = arith.constant 0 : index
    %c0_98 = arith.constant 0 : index
    %258 = vector.load %arg12[%c0_97, %c0_98] : memref<32x1024xf32, #tpu.memory_space<vmem>>, vector<32x1024xf32>
    %cst_99 = arith.constant dense<0.000000e+00> : vector<8x1024xf32>
    %259 = tpu.matmul %257, %258, %cst_99 {dimension_numbers = #tpu.dot_dimension_numbers<[1], [0], [0], [1], [0, 0, 1, 1], [], []>} : vector<8x32xf32>, vector<32x1024xf32>, vector<8x1024xf32> -> vector<8x1024xf32>
    %c0_100 = arith.constant 0 : index
    %c0_101 = arith.constant 0 : index
    %260 = vector.load %arg13[%c0_100, %c0_101] : memref<1x1024xf32, #tpu.memory_space<vmem>>, vector<1x1024xf32>
    %261 = vector.broadcast %260 : vector<1x1024xf32> to vector<8x1024xf32>
    %262 = arith.addf %259, %261 : vector<8x1024xf32>
    %cst_102 = arith.constant 0.000000e+00 : f32
    %263 = vector.broadcast %cst_102 : f32 to vector<8x1024xf32>
    %264 = arith.subf %263, %262 : vector<8x1024xf32>
    %265 = math.exp %264 : vector<8x1024xf32>
    %cst_103 = arith.constant 1.000000e+00 : f32
    %266 = vector.broadcast %cst_103 : f32 to vector<8x1024xf32>
    %267 = arith.addf %266, %265 : vector<8x1024xf32>
    %268 = tpu.reciprocal %267 {approx = true} : vector<8x1024xf32> -> vector<8x1024xf32>
    %c0_104 = arith.constant 0 : index
    %c0_105 = arith.constant 0 : index
    %269 = vector.load %arg14[%c0_104, %c0_105] : memref<8x1024xf32, #tpu.memory_space<vmem>>, vector<8x1024xf32>
    tpu.vector_store %arg14[%c0_104, %c0_105], %268 {strides = array<i32>} : memref<8x1024xf32, #tpu.memory_space<vmem>>, vector<8x1024xf32>,
    return
  }
}

</mosaic_0001>

<llo_original>
// kernel: planar_vae_forward.1
$region0: #{planar_vae_forward.1}
  #allocation0 [shape = 'u32[]', space=smem, size = 0x4, offset = 0x4, fixed_abs, tag = 'smem constant byte address 0x4 - core index']
  #allocation1 [shape = 'u32[72,128]{1,0:T(1,128)}', space=vmem, size = 0x9000, scoped, tag = 'internal scratch']
  %s0 = inlined_call_operand.vmem [shape: f32[8,1024], index: 0, kind: input, shape index: {}]
  %s1 = inlined_call_operand.vmem [shape: f32[8,8], index: 1, kind: input, shape index: {}]
  %s2 = inlined_call_operand.vmem [shape: f32[1024,32], index: 2, kind: input, shape index: {}]
  %s3 = inlined_call_operand.vmem [shape: f32[1,32], index: 3, kind: input, shape index: {}]
  %s4 = inlined_call_operand.vmem [shape: f32[32,32], index: 4, kind: input, shape index: {}]
  %s5 = inlined_call_operand.vmem [shape: f32[1,32], index: 5, kind: input, shape index: {}]
  %s6 = inlined_call_operand.vmem [shape: f32[32,84], index: 6, kind: input, shape index: {}]
  %s7 = inlined_call_operand.vmem [shape: f32[1,84], index: 7, kind: input, shape index: {}]
  %s8 = inlined_call_operand.vmem [shape: f32[8,32], index: 8, kind: input, shape index: {}]
  %s9 = inlined_call_operand.vmem [shape: f32[1,32], index: 9, kind: input, shape index: {}]
  %s10 = inlined_call_operand.vmem [shape: f32[32,32], index: 10, kind: input, shape index: {}]
  %s11 = inlined_call_operand.vmem [shape: f32[1,32], index: 11, kind: input, shape index: {}]
  %s12 = inlined_call_operand.vmem [shape: f32[32,1024], index: 12, kind: input, shape index: {}]
  %s13 = inlined_call_operand.vmem [shape: f32[1,1024], index: 13, kind: input, shape index: {}]
  %s14 = inlined_call_operand.vmem [shape: f32[8,1024], index: 14, kind: output, shape index: {0}]
  %s15 = inlined_call_operand.vmem [shape: f32[8,40], index: 15, kind: output, shape index: {1}]
  %s16 = inlined_call_operand.vmem [shape: f32[8,4], index: 16, kind: output, shape index: {2}]
  %s17 = inlined_call_operand.vmem [shape: f32[8,8], index: 17, kind: output, shape index: {3}]
  %s18 = inlined_call_operand.vmem [shape: f32[8,8], index: 18, kind: output, shape index: {4}]
  %s19 = inlined_call_operand.vmem [shape: f32[8,32], index: 19, kind: output, shape index: {5}]
  %20 = xla_tuple %s14, %s15, %s16, %s17, %s18, %s19
  %s21 = sld [smem:[#allocation0]]
  $region106: #{planar_vae_forward.1} parent=0
    _
  %s23 = ssub.s32 1, %s21
  %s24 = scalar_select 0, %s23, %s21
  // Predicated region
  $region2: #{planar_vae_forward.1} parent=0 // pred_check
    _
  $region3: #{planar_vae_forward.1} parent=0 // pred_check_branch
    %26 = sbr.rel (0) target = $region5
  $region4: #{planar_vae_forward.1} parent=0 // pred_region
    _
  $region5: #{planar_vae_forward.1} parent=0 // pred_fallthru
    _
  // Predicated region
  $region6: #{planar_vae_forward.1} parent=0 // pred_check
    _
  $region7: #{planar_vae_forward.1} parent=0 // pred_check_branch
    %28 = sbr.rel (0) target = $region9
  $region8: #{planar_vae_forward.1} parent=0 // pred_region
    _
  $region9: #{planar_vae_forward.1} parent=0 // pred_fallthru
    _
  // Predicated region
  $region10: #{planar_vae_forward.1} parent=0 // pred_check
    _
  $region11: #{planar_vae_forward.1} parent=0 // pred_check_branch
    %30 = sbr.rel (0) target = $region13
  $region12: #{planar_vae_forward.1} parent=0 // pred_region
    _
  $region13: #{planar_vae_forward.1} parent=0 // pred_fallthru
    _
  // Predicated region
  $region14: #{planar_vae_forward.1} parent=0 // pred_check
    _
  $region15: #{planar_vae_forward.1} parent=0 // pred_check_branch
    %32 = sbr.rel (0) target = $region17
  $region16: #{planar_vae_forward.1} parent=0 // pred_region
    _
  $region17: #{planar_vae_forward.1} parent=0 // pred_fallthru
    _
  // Predicated region
  $region18: #{planar_vae_forward.1} parent=0 // pred_check
    _
  $region19: #{planar_vae_forward.1} parent=0 // pred_check_branch
    %34 = sbr.rel (0) target = $region21
  $region20: #{planar_vae_forward.1} parent=0 // pred_region
    _
  $region21: #{planar_vae_forward.1} parent=0 // pred_fallthru
    _
  // Predicated region
  $region22: #{planar_vae_forward.1} parent=0 // pred_check
    _
  $region23: #{planar_vae_forward.1} parent=0 // pred_check_branch
    %36 = sbr.rel (0) target = $region25
  $region24: #{planar_vae_forward.1} parent=0 // pred_region
    _
  $region25: #{planar_vae_forward.1} parent=0 // pred_fallthru
    _
  // Predicated region
  $region26: #{planar_vae_forward.1} parent=0 // pred_check
    _
  $region27: #{planar_vae_forward.1} parent=0 // pred_check_branch
    %38 = sbr.rel (0) target = $region29
  $region28: #{planar_vae_forward.1} parent=0 // pred_region
    _
  $region29: #{planar_vae_forward.1} parent=0 // pred_fallthru
    _
  // Predicated region
  $region30: #{planar_vae_forward.1} parent=0 // pred_check
    _
  $region31: #{planar_vae_forward.1} parent=0 // pred_check_branch
    %40 = sbr.rel (0) target = $region33
  $region32: #{planar_vae_forward.1} parent=0 // pred_region
    _
  $region33: #{planar_vae_forward.1} parent=0 // pred_fallthru
    _
  // Predicated region
  $region34: #{planar_vae_forward.1} parent=0 // pred_check
    _
  $region35: #{planar_vae_forward.1} parent=0 // pred_check_branch
    %42 = sbr.rel (0) target = $region37
  $region36: #{planar_vae_forward.1} parent=0 // pred_region
    _
  $region37: #{planar_vae_forward.1} parent=0 // pred_fallthru
    _
  // Predicated region
  $region38: #{planar_vae_forward.1} parent=0 // pred_check
    _
  $region39: #{planar_vae_forward.1} parent=0 // pred_check_branch
    %44 = sbr.rel (0) target = $region41
  $region40: #{planar_vae_forward.1} parent=0 // pred_region
    _
  $region41: #{planar_vae_forward.1} parent=0 // pred_fallthru
    _
  // Predicated region
  $region42: #{planar_vae_forward.1} parent=0 // pred_check
    _
  $region43: #{planar_vae_forward.1} parent=0 // pred_check_branch
    %46 = sbr.rel (0) target = $region45
  $region44: #{planar_vae_forward.1} parent=0 // pred_region
    _
  $region45: #{planar_vae_forward.1} parent=0 // pred_fallthru
    _
  // Predicated region
  $region46: #{planar_vae_forward.1} parent=0 // pred_check
    _
  $region47: #{planar_vae_forward.1} parent=0 // pred_check_branch
    %48 = sbr.rel (0) target = $region49
  $region48: #{planar_vae_forward.1} parent=0 // pred_region
    _
  $region49: #{planar_vae_forward.1} parent=0 // pred_fallthru
    _
  // Predicated region
  $region50: #{planar_vae_forward.1} parent=0 // pred_check
    _
  $region51: #{planar_vae_forward.1} parent=0 // pred_check_branch
    %50 = sbr.rel (0) target = $region53
  $region52: #{planar_vae_forward.1} parent=0 // pred_region
    _
  $region53: #{planar_vae_forward.1} parent=0 // pred_fallthru
    _
  // Predicated region
  $region54: #{planar_vae_forward.1} parent=0 // pred_check
    _
  $region55: #{planar_vae_forward.1} parent=0 // pred_check_branch
    %52 = sbr.rel (0) target = $region57
  $region56: #{planar_vae_forward.1} parent=0 // pred_region
    _
  $region57: #{planar_vae_forward.1} parent=0 // pred_fallthru
    _
  %v53 = vld [vmem:[%s0] sm:$0xff]
  %v54 = vld [vmem:[%s0 + $0x8] sm:$0xff]
  %v55 = vld [vmem:[%s0 + $0x10] sm:$0xff]
  %v56 = vld [vmem:[%s0 + $0x18] sm:$0xff]
  %v57 = vld [vmem:[%s0 + $0x20] sm:$0xff]
  %v58 = vld [vmem:[%s0 + $0x28] sm:$0xff]
  %v59 = vld [vmem:[%s0 + $0x30] sm:$0xff]
  %v60 = vld [vmem:[%s0 + $0x38] sm:$0xff]
  %v61 = vld [vmem:[%s2] sm:$0xff]
  %v62 = vld [vmem:[%s2 + $0x8] sm:$0xff]
  %v63 = vld [vmem:[%s2 + $0x10] sm:$0xff]
  %v64 = vld [vmem:[%s2 + $0x18] sm:$0xff]
  %v65 = vld [vmem:[%s2 + $0x20] sm:$0xff]
  %v66 = vld [vmem:[%s2 + $0x28] sm:$0xff]
  %v67 = vld [vmem:[%s2 + $0x30] sm:$0xff]
  %v68 = vld [vmem:[%s2 + $0x38] sm:$0xff]
  %v69 = vld [vmem:[%s2 + $0x40] sm:$0xff]
  %v70 = vld [vmem:[%s2 + $0x48] sm:$0xff]
  %v71 = vld [vmem:[%s2 + $0x50] sm:$0xff]
  %v72 = vld [vmem:[%s2 + $0x58] sm:$0xff]
  %v73 = vld [vmem:[%s2 + $0x60] sm:$0xff]
  %v74 = vld [vmem:[%s2 + $0x68] sm:$0xff]
  %v75 = vld [vmem:[%s2 + $0x70] sm:$0xff]
  %v76 = vld [vmem:[%s2 + $0x78] sm:$0xff]
  %v77 = vld [vmem:[%s2 + $0x80] sm:$0xff]
  %v78 = vld [vmem:[%s2 + $0x88] sm:$0xff]
  %v79 = vld [vmem:[%s2 + $0x90] sm:$0xff]
  %v80 = vld [vmem:[%s2 + $0x98] sm:$0xff]
  %v81 = vld [vmem:[%s2 + $0xa0] sm:$0xff]
  %v82 = vld [vmem:[%s2 + $0xa8] sm:$0xff]
  %v83 = vld [vmem:[%s2 + $0xb0] sm:$0xff]
  %v84 = vld [vmem:[%s2 + $0xb8] sm:$0xff]
  %v85 = vld [vmem:[%s2 + $0xc0] sm:$0xff]
  %v86 = vld [vmem:[%s2 + $0xc8] sm:$0xff]
  %v87 = vld [vmem:[%s2 + $0xd0] sm:$0xff]
  %v88 = vld [vmem:[%s2 + $0xd8] sm:$0xff]
  %v89 = vld [vmem:[%s2 + $0xe0] sm:$0xff]
  %v90 = vld [vmem:[%s2 + $0xe8] sm:$0xff]
  %v91 = vld [vmem:[%s2 + $0xf0] sm:$0xff]
  %v92 = vld [vmem:[%s2 + $0xf8] sm:$0xff]
  %v93 = vld [vmem:[%s2 + $0x100] sm:$0xff]
  %v94 = vld [vmem:[%s2 + $0x108] sm:$0xff]
  %v95 = vld [vmem:[%s2 + $0x110] sm:$0xff]
  %v96 = vld [vmem:[%s2 + $0x118] sm:$0xff]
  %v97 = vld [vmem:[%s2 + $0x120] sm:$0xff]
  %v98 = vld [vmem:[%s2 + $0x128] sm:$0xff]
  %v99 = vld [vmem:[%s2 + $0x130] sm:$0xff]
  %v100 = vld [vmem:[%s2 + $0x138] sm:$0xff]
  %v101 = vld [vmem:[%s2 + $0x140] sm:$0xff]
  %v102 = vld [vmem:[%s2 + $0x148] sm:$0xff]
  %v103 = vld [vmem:[%s2 + $0x150] sm:$0xff]
  %v104 = vld [vmem:[%s2 + $0x158] sm:$0xff]
  %v105 = vld [vmem:[%s2 + $0x160] sm:$0xff]
  %v106 = vld [vmem:[%s2 + $0x168] sm:$0xff]
  %v107 = vld [vmem:[%s2 + $0x170] sm:$0xff]
  %v108 = vld [vmem:[%s2 + $0x178] sm:$0xff]
  %v109 = vld [vmem:[%s2 + $0x180] sm:$0xff]
  %v110 = vld [vmem:[%s2 + $0x188] sm:$0xff]
  %v111 = vld [vmem:[%s2 + $0x190] sm:$0xff]
  %v112 = vld [vmem:[%s2 + $0x198] sm:$0xff]
  %v113 = vld [vmem:[%s2 + $0x1a0] sm:$0xff]
  %v114 = vld [vmem:[%s2 + $0x1a8] sm:$0xff]
  %v115 = vld [vmem:[%s2 + $0x1b0] sm:$0xff]
  %v116 = vld [vmem:[%s2 + $0x1b8] sm:$0xff]
  %v117 = vld [vmem:[%s2 + $0x1c0] sm:$0xff]
  %v118 = vld [vmem:[%s2 + $0x1c8] sm:$0xff]
  %v119 = vld [vmem:[%s2 + $0x1d0] sm:$0xff]
  %v120 = vld [vmem:[%s2 + $0x1d8] sm:$0xff]
  %v121 = vld [vmem:[%s2 + $0x1e0] sm:$0xff]
  %v122 = vld [vmem:[%s2 + $0x1e8] sm:$0xff]
  %v123 = vld [vmem:[%s2 + $0x1f0] sm:$0xff]
  %v124 = vld [vmem:[%s2 + $0x1f8] sm:$0xff]
  %v125 = vld [vmem:[%s2 + $0x200] sm:$0xff]
  %v126 = vld [vmem:[%s2 + $0x208] sm:$0xff]
  %v127 = vld [vmem:[%s2 + $0x210] sm:$0xff]
  %v128 = vld [vmem:[%s2 + $0x218] sm:$0xff]
  %v129 = vld [vmem:[%s2 + $0x220] sm:$0xff]
  %v130 = vld [vmem:[%s2 + $0x228] sm:$0xff]
  %v131 = vld [vmem:[%s2 + $0x230] sm:$0xff]
  %v132 = vld [vmem:[%s2 + $0x238] sm:$0xff]
  %v133 = vld [vmem:[%s2 + $0x240] sm:$0xff]
  %v134 = vld [vmem:[%s2 + $0x248] sm:$0xff]
  %v135 = vld [vmem:[%s2 + $0x250] sm:$0xff]
  %v136 = vld [vmem:[%s2 + $0x258] sm:$0xff]
  %v137 = vld [vmem:[%s2 + $0x260] sm:$0xff]
  %v138 = vld [vmem:[%s2 + $0x268] sm:$0xff]
  %v139 = vld [vmem:[%s2 + $0x270] sm:$0xff]
  %v140 = vld [vmem:[%s2 + $0x278] sm:$0xff]
  %v141 = vld [vmem:[%s2 + $0x280] sm:$0xff]
  %v142 = vld [vmem:[%s2 + $0x288] sm:$0xff]
  %v143 = vld [vmem:[%s2 + $0x290] sm:$0xff]
  %v144 = vld [vmem:[%s2 + $0x298] sm:$0xff]
  %v145 = vld [vmem:[%s2 + $0x2a0] sm:$0xff]
  %v146 = vld [vmem:[%s2 + $0x2a8] sm:$0xff]
  %v147 = vld [vmem:[%s2 + $0x2b0] sm:$0xff]
  %v148 = vld [vmem:[%s2 + $0x2b8] sm:$0xff]
  %v149 = vld [vmem:[%s2 + $0x2c0] sm:$0xff]
  %v150 = vld [vmem:[%s2 + $0x2c8] sm:$0xff]
  %v151 = vld [vmem:[%s2 + $0x2d0] sm:$0xff]
  %v152 = vld [vmem:[%s2 + $0x2d8] sm:$0xff]
  %v153 = vld [vmem:[%s2 + $0x2e0] sm:$0xff]
  %v154 = vld [vmem:[%s2 + $0x2e8] sm:$0xff]
  %v155 = vld [vmem:[%s2 + $0x2f0] sm:$0xff]
  %v156 = vld [vmem:[%s2 + $0x2f8] sm:$0xff]
  %v157 = vld [vmem:[%s2 + $0x300] sm:$0xff]
  %v158 = vld [vmem:[%s2 + $0x308] sm:$0xff]
  %v159 = vld [vmem:[%s2 + $0x310] sm:$0xff]
  %v160 = vld [vmem:[%s2 + $0x318] sm:$0xff]
  %v161 = vld [vmem:[%s2 + $0x320] sm:$0xff]
  %v162 = vld [vmem:[%s2 + $0x328] sm:$0xff]
  %v163 = vld [vmem:[%s2 + $0x330] sm:$0xff]
  %v164 = vld [vmem:[%s2 + $0x338] sm:$0xff]
  %v165 = vld [vmem:[%s2 + $0x340] sm:$0xff]
  %v166 = vld [vmem:[%s2 + $0x348] sm:$0xff]
  %v167 = vld [vmem:[%s2 + $0x350] sm:$0xff]
  %v168 = vld [vmem:[%s2 + $0x358] sm:$0xff]
  %v169 = vld [vmem:[%s2 + $0x360] sm:$0xff]
  %v170 = vld [vmem:[%s2 + $0x368] sm:$0xff]
  %v171 = vld [vmem:[%s2 + $0x370] sm:$0xff]
  %v172 = vld [vmem:[%s2 + $0x378] sm:$0xff]
  %v173 = vld [vmem:[%s2 + $0x380] sm:$0xff]
  %v174 = vld [vmem:[%s2 + $0x388] sm:$0xff]
  %v175 = vld [vmem:[%s2 + $0x390] sm:$0xff]
  %v176 = vld [vmem:[%s2 + $0x398] sm:$0xff]
  %v177 = vld [vmem:[%s2 + $0x3a0] sm:$0xff]
  %v178 = vld [vmem:[%s2 + $0x3a8] sm:$0xff]
  %v179 = vld [vmem:[%s2 + $0x3b0] sm:$0xff]
  %v180 = vld [vmem:[%s2 + $0x3b8] sm:$0xff]
  %v181 = vld [vmem:[%s2 + $0x3c0] sm:$0xff]
  %v182 = vld [vmem:[%s2 + $0x3c8] sm:$0xff]
  %v183 = vld [vmem:[%s2 + $0x3d0] sm:$0xff]
  %v184 = vld [vmem:[%s2 + $0x3d8] sm:$0xff]
  %v185 = vld [vmem:[%s2 + $0x3e0] sm:$0xff]
  %v186 = vld [vmem:[%s2 + $0x3e8] sm:$0xff]
  %v187 = vld [vmem:[%s2 + $0x3f0] sm:$0xff]
  %v188 = vld [vmem:[%s2 + $0x3f8] sm:$0xff]
  %v189 = vld [vmem:[%s3] sm:$0x1]
  %v191 = vperm.slane %v189, 0
  %193 = vmatpush.msra.mxu0 %v76
  %194 = vmatpush.msra.mxu0 %v75
  %195 = vmatpush.msra.mxu0 %v74
  %196 = vmatpush.msra.mxu0 %v73
  %197 = vmatpush.msra.mxu0 %v72
  %198 = vmatpush.msra.mxu0 %v71
  %199 = vmatpush.msra.mxu0 %v70
  %200 = vmatpush.msra.mxu0 %v69
  %201 = vmatpush.msra.mxu0 %v68
  %202 = vmatpush.msra.mxu0 %v67
  %203 = vmatpush.msra.mxu0 %v66
  %204 = vmatpush.msra.mxu0 %v65
  %205 = vmatpush.msra.mxu0 %v64
  %206 = vmatpush.msra.mxu0 %v63
  %207 = vmatpush.msra.mxu0 %v62
  %208 = vmatpush.msra.mxu0 %v61
  %209 = vmatmul.f32.gmra.mxu0 %v53
  %v210 = vpop.f32.mrf.mxu0
  %v211 = vadd.f32 %v191, %v210
  %212 = vdwg.mxu0
  %213 = vmatpush.msra.mxu0 %v92
  %214 = vmatpush.msra.mxu0 %v91
  %215 = vmatpush.msra.mxu0 %v90
  %216 = vmatpush.msra.mxu0 %v89
  %217 = vmatpush.msra.mxu0 %v88
  %218 = vmatpush.msra.mxu0 %v87
  %219 = vmatpush.msra.mxu0 %v86
  %220 = vmatpush.msra.mxu0 %v85
  %221 = vmatpush.msra.mxu0 %v84
  %222 = vmatpush.msra.mxu0 %v83
  %223 = vmatpush.msra.mxu0 %v82
  %224 = vmatpush.msra.mxu0 %v81
  %225 = vmatpush.msra.mxu0 %v80
  %226 = vmatpush.msra.mxu0 %v79
  %227 = vmatpush.msra.mxu0 %v78
  %228 = vmatpush.msra.mxu0 %v77
  %229 = vmatmul.f32.gmra.mxu0 %v54
  %v230 = vpop.f32.mrf.mxu0
  %v231 = vadd.f32 %v211, %v230
  %232 = vdwg.mxu0
  %233 = vmatpush.msra.mxu0 %v108
  %234 = vmatpush.msra.mxu0 %v107
  %235 = vmatpush.msra.mxu0 %v106
  %236 = vmatpush.msra.mxu0 %v105
  %237 = vmatpush.msra.mxu0 %v104
  %238 = vmatpush.msra.mxu0 %v103
  %239 = vmatpush.msra.mxu0 %v102
  %240 = vmatpush.msra.mxu0 %v101
  %241 = vmatpush.msra.mxu0 %v100
  %242 = vmatpush.msra.mxu0 %v99
  %243 = vmatpush.msra.mxu0 %v98
  %244 = vmatpush.msra.mxu0 %v97
  %245 = vmatpush.msra.mxu0 %v96
  %246 = vmatpush.msra.mxu0 %v95
  %247 = vmatpush.msra.mxu0 %v94
  %248 = vmatpush.msra.mxu0 %v93
  %249 = vmatmul.f32.gmra.mxu0 %v55
  %v250 = vpop.f32.mrf.mxu0
  %v251 = vadd.f32 %v231, %v250
  %252 = vdwg.mxu0
  %253 = vmatpush.msra.mxu0 %v124
  %254 = vmatpush.msra.mxu0 %v123
  %255 = vmatpush.msra.mxu0 %v122
  %256 = vmatpush.msra.mxu0 %v121
  %257 = vmatpush.msra.mxu0 %v120
  %258 = vmatpush.msra.mxu0 %v119
  %259 = vmatpush.msra.mxu0 %v118
  %260 = vmatpush.msra.mxu0 %v117
  %261 = vmatpush.msra.mxu0 %v116
  %262 = vmatpush.msra.mxu0 %v115
  %263 = vmatpush.msra.mxu0 %v114
  %264 = vmatpush.msra.mxu0 %v113
  %265 = vmatpush.msra.mxu0 %v112
  %266 = vmatpush.msra.mxu0 %v111
  %267 = vmatpush.msra.mxu0 %v110
  %268 = vmatpush.msra.mxu0 %v109
  %269 = vmatmul.f32.gmra.mxu0 %v56
  %v270 = vpop.f32.mrf.mxu0
  %v271 = vadd.f32 %v251, %v270
  %272 = vdwg.mxu0
  %273 = vmatpush.msra.mxu0 %v140
  %274 = vmatpush.msra.mxu0 %v139
  %275 = vmatpush.msra.mxu0 %v138
  %276 = vmatpush.msra.mxu0 %v137
  %277 = vmatpush.msra.mxu0 %v136
  %278 = vmatpush.msra.mxu0 %v135
  %279 = vmatpush.msra.mxu0 %v134
  %280 = vmatpush.msra.mxu0 %v133
  %281 = vmatpush.msra.mxu0 %v132
  %282 = vmatpush.msra.mxu0 %v131
  %283 = vmatpush.msra.mxu0 %v130
  %284 = vmatpush.msra.mxu0 %v129
  %285 = vmatpush.msra.mxu0 %v128
  %286 = vmatpush.msra.mxu0 %v127
  %287 = vmatpush.msra.mxu0 %v126
  %288 = vmatpush.msra.mxu0 %v125
  %289 = vmatmul.f32.gmra.mxu0 %v57
  %v290 = vpop.f32.mrf.mxu0
  %v291 = vadd.f32 %v271, %v290
  %292 = vdwg.mxu0
  %293 = vmatpush.msra.mxu0 %v156
  %294 = vmatpush.msra.mxu0 %v155
  %295 = vmatpush.msra.mxu0 %v154
  %296 = vmatpush.msra.mxu0 %v153
  %297 = vmatpush.msra.mxu0 %v152
  %298 = vmatpush.msra.mxu0 %v151
  %299 = vmatpush.msra.mxu0 %v150
  %300 = vmatpush.msra.mxu0 %v149
  %301 = vmatpush.msra.mxu0 %v148
  %302 = vmatpush.msra.mxu0 %v147
  %303 = vmatpush.msra.mxu0 %v146
  %304 = vmatpush.msra.mxu0 %v145
  %305 = vmatpush.msra.mxu0 %v144
  %306 = vmatpush.msra.mxu0 %v143
  %307 = vmatpush.msra.mxu0 %v142
  %308 = vmatpush.msra.mxu0 %v141
  %309 = vmatmul.f32.gmra.mxu0 %v58
  %v310 = vpop.f32.mrf.mxu0
  %v311 = vadd.f32 %v291, %v310
  %312 = vdwg.mxu0
  %313 = vmatpush.msra.mxu0 %v172
  %314 = vmatpush.msra.mxu0 %v171
  %315 = vmatpush.msra.mxu0 %v170
  %316 = vmatpush.msra.mxu0 %v169
  %317 = vmatpush.msra.mxu0 %v168
  %318 = vmatpush.msra.mxu0 %v167
  %319 = vmatpush.msra.mxu0 %v166
  %320 = vmatpush.msra.mxu0 %v165
  %321 = vmatpush.msra.mxu0 %v164
  %322 = vmatpush.msra.mxu0 %v163
  %323 = vmatpush.msra.mxu0 %v162
  %324 = vmatpush.msra.mxu0 %v161
  %325 = vmatpush.msra.mxu0 %v160
  %326 = vmatpush.msra.mxu0 %v159
  %327 = vmatpush.msra.mxu0 %v158
  %328 = vmatpush.msra.mxu0 %v157
  %329 = vmatmul.f32.gmra.mxu0 %v59
  %v330 = vpop.f32.mrf.mxu0
  %v331 = vadd.f32 %v311, %v330
  %332 = vdwg.mxu0
  %333 = vmatpush.msra.mxu0 %v188
  %334 = vmatpush.msra.mxu0 %v187
  %335 = vmatpush.msra.mxu0 %v186
  %336 = vmatpush.msra.mxu0 %v185
  %337 = vmatpush.msra.mxu0 %v184
  %338 = vmatpush.msra.mxu0 %v183
  %339 = vmatpush.msra.mxu0 %v182
  %340 = vmatpush.msra.mxu0 %v181
  %341 = vmatpush.msra.mxu0 %v180
  %342 = vmatpush.msra.mxu0 %v179
  %343 = vmatpush.msra.mxu0 %v178
  %344 = vmatpush.msra.mxu0 %v177
  %345 = vmatpush.msra.mxu0 %v176
  %346 = vmatpush.msra.mxu0 %v175
  %347 = vmatpush.msra.mxu0 %v174
  %348 = vmatpush.msra.mxu0 %v173
  %349 = vmatmul.f32.gmra.mxu0 %v60
  %v350 = vpop.f32.mrf.mxu0
  %v351 = vadd.f32 %v331, %v350
  %352 = vdwg.mxu0
  %v353 = vmax.f32 %v351, 0.0
  %v354 = vld [vmem:[%s4] sm:$0xff]
  %v355 = vld [vmem:[%s4 + $0x8] sm:$0xff]
  %v356 = vld [vmem:[%s4 + $0x10] sm:$0xff]
  %v357 = vld [vmem:[%s4 + $0x18] sm:$0xff]
  %v358 = vld [vmem:[%s5] sm:$0x1]
  %v360 = vperm.slane %v358, 0
  %vm362 = vcmask 261120
  %v364 = vsel %vm362, %v353, 0
  %366 = vmatpush.msra.mxu0 0.0
  %367 = vmatpush.msra.mxu0 0.0
  %368 = vmatpush.msra.mxu0 0.0
  %369 = vmatpush.msra.mxu0 0.0
  %370 = vmatpush.msra.mxu0 0.0
  %371 = vmatpush.msra.mxu0 0.0
  %372 = vmatpush.msra.mxu0 0.0
  %373 = vmatpush.msra.mxu0 0.0
  %374 = vmatpush.msra.mxu0 0.0
  %375 = vmatpush.msra.mxu0 0.0
  %376 = vmatpush.msra.mxu0 0.0
  %377 = vmatpush.msra.mxu0 0.0
  %378 = vmatpush.msra.mxu0 %v357
  %379 = vmatpush.msra.mxu0 %v356
  %380 = vmatpush.msra.mxu0 %v355
  %381 = vmatpush.msra.mxu0 %v354
  %382 = vmatmul.f32.gmra.mxu0 %v364
  %v383 = vpop.f32.mrf.mxu0
  %v384 = vadd.f32 %v360, %v383
  %385 = vdwg.mxu0
  %v386 = vmax.f32 %v384, 0.0
  %387 = vst.msk [vmem:[%s19] sm:$0xff] %vm362, %v386
  %v388 = vld [vmem:[%s6] sm:$0xff]
  %v389 = vld [vmem:[%s6 + $0x8] sm:$0xff]
  %v390 = vld [vmem:[%s6 + $0x10] sm:$0xff]
  %v391 = vld [vmem:[%s6 + $0x18] sm:$0xff]
  %v392 = vld [vmem:[%s7] sm:$0x1]
  %v394 = vperm.slane %v392, 0
  %v397 = vsel %vm362, %v386, 0
  %399 = vmatpush.msra.mxu0 0.0
  %400 = vmatpush.msra.mxu0 0.0
  %401 = vmatpush.msra.mxu0 0.0
  %402 = vmatpush.msra.mxu0 0.0
  %403 = vmatpush.msra.mxu0 0.0
  %404 = vmatpush.msra.mxu0 0.0
  %405 = vmatpush.msra.mxu0 0.0
  %406 = vmatpush.msra.mxu0 0.0
  %407 = vmatpush.msra.mxu0 0.0
  %408 = vmatpush.msra.mxu0 0.0
  %409 = vmatpush.msra.mxu0 0.0
  %410 = vmatpush.msra.mxu0 0.0
  %411 = vmatpush.msra.mxu0 %v391
  %412 = vmatpush.msra.mxu0 %v390
  %413 = vmatpush.msra.mxu0 %v389
  %414 = vmatpush.msra.mxu0 %v388
  %415 = vmatmul.f32.gmra.mxu0 %v397
  %v416 = vpop.f32.mrf.mxu0
  %v417 = vadd.f32 %v394, %v416
  %418 = vdwg.mxu0
  %vm419 = vcmask 64512
  %420 = vst.msk [vmem:[%s17] sm:$0xff] %vm419, %v417
  %422 = vrot.lane.b32.xlu0 %v417, 120
  %v423 = vpop.permute.xlu0 %422
  %425 = vst.msk [vmem:[%s18] sm:$0xff] %vm419, %v423
  %v426 = vmul.f32 %v417, 0.5
  %v427 = vmul.f32 %v426, 1.442695
  %v428 = vpow.pop %v427
  %v429 = vld [vmem:[%s1] sm:$0xff]
  %431 = vrot.lane.b32.xlu0 %v429, 8
  %v432 = vpop.permute.xlu0 %431
  %v434 = vmul.f32 %v428, %v432
  %436 = vrot.lane.b32.xlu0 %v434, 120
  %v437 = vpop.permute.xlu0 %436
  %v439 = vadd.f32 %v417, %v437
  %440 = vst.msk [vmem:[%s15] sm:$0xff] %vm419, %v439
  %441 = vrot.lane.b32.xlu0 %v417, 32
  %v442 = vpop.permute.xlu0 %441
  %v444 = vmul.f32 %v417, %v442
  %446 = vrot.lane.b32.xlu0 %v444, 80
  %v447 = vpop.permute.xlu0 %446
  %v449 = vsel %vm419, %v447, 0.0
  %450 = vadd.xlane.f32.xlu0 %v449
  %v451 = vpop.xlane.xlu0 %450
  %v452 = vmax.f32 %v451, 0.0
  %v453 = vand.u32 2147483647, %v451
  %v454 = vsub.f32 0.0, %v453
  %v455 = vmul.f32 %v454, 1.442695
  %v456 = vpow.pop %v455
  %v457 = vadd.f32 %v456, 1.0
  %v458 = vlog2.pop %v457
  %v459 = vmul.f32 %v458, 0.6931472
  %v460 = vadd.f32 %v452, %v459
  %v461 = vadd.f32 %v460, -1.0
  %v462 = vmul.f32 %v417, %v417
  %464 = vrot.lane.b32.xlu0 %v462, 80
  %v465 = vpop.permute.xlu0 %464
  %v467 = vsel %vm419, %v465, 0.0
  %468 = vadd.xlane.f32.xlu0 %v467
  %v469 = vpop.xlane.xlu0 %468
  %v470 = vadd.f32 %v469, 1e-08
  %v471 = vsub.f32 %v461, %v451
  %v472 = vmul.f32 %v471, %v417
  %v473 = vrcp.pop %v470
  %v474 = vmul.f32 %v470, %v473
  %v475 = vsub.f32 1.0, %v474
  %v476 = vmul.f32 %v473, %v475
  %v477 = vadd.f32 %v473, %v476
  %vm478 = vweird.f32 %v470
  %vm479 = vweird.f32 %v473
  %vm480 = vmor %vm478, %vm479
  %v481 = vsel %vm480, %v473, %v477
  %v482 = vand.u32 2147483647, %v470
  %vm483 = vcmp.eq.f32.partialorder %v482, 8.507059e+37
  %v484 = vand.u32 %v470, 2147483648
  %v485 = vor.u32 1.1754944e-38, %v484
  %v486 = vsel %vm483, %v485, %v481
  %v487 = vmul.f32 %v472, %v486
  %489 = vrot.lane.b32.xlu0 %v487, 96
  %v490 = vpop.permute.xlu0 %489
  %v492 = vadd.f32 %v417, %v490
  %494 = vrot.lane.b32.xlu0 %v439, 48
  %v495 = vpop.permute.xlu0 %494
  %v497 = vmul.f32 %v417, %v495
  %499 = vrot.lane.b32.xlu0 %v497, 80
  %v500 = vpop.permute.xlu0 %499
  %v502 = vsel %vm419, %v500, 0.0
  %503 = vadd.xlane.f32.xlu0 %v502
  %v504 = vpop.xlane.xlu0 %503
  %v505 = vadd.f32 %v504, %v417
  %v506 = vtanh.pop %v505
  %508 = vset.pattern.permute.xlu0 80
  %509 = vperm.xlu0 %508, %v506
  %v510 = vpop.permute.xlu0 %509
  %v512 = vmul.f32 %v492, %v510
  %514 = vrot.lane.b32.xlu0 %v512, 112
  %v515 = vpop.permute.xlu0 %514
  %v517 = vadd.f32 %v439, %v515
  %519 = vrot.lane.b32.xlu0 %v517, 8
  %v520 = vpop.permute.xlu0 %519
  %vm522 = vcmask 130112
  %523 = vst.msk [vmem:[%s15] sm:$0xff] %vm522, %v520
  %v524 = vmul.f32 %v506, %v506
  %v525 = vsub.f32 1.0, %v524
  %527 = vset.pattern.permute.xlu0 80
  %528 = vperm.xlu0 %527, %v525
  %v529 = vpop.permute.xlu0 %528
  %v531 = vmul.f32 %v417, %v529
  %533 = vrot.lane.b32.xlu0 %v492, 32
  %v534 = vpop.permute.xlu0 %533
  %v536 = vmul.f32 %v531, %v534
  %538 = vrot.lane.b32.xlu0 %v536, 80
  %v539 = vpop.permute.xlu0 %538
  %v541 = vsel %vm419, %v539, 0.0
  %542 = vadd.xlane.f32.xlu0 %v541
  %v543 = vpop.xlane.xlu0 %542
  %v544 = vadd.f32 %v543, 1.0
  %v545 = vand.u32 2147483647, %v544
  %v546 = vadd.f32 %v545, 1e-08
  %v547 = vlog2.pop %v546
  %v548 = vmul.f32 %v547, 0.6931472
  %vm549 = vcmask 7168
  %550 = vst.msk [vmem:[%s16] sm:$0xff] %vm549, %v548
  %551 = vrot.lane.b32.xlu0 %v444, 72
  %v552 = vpop.permute.xlu0 %551
  %v554 = vsel %vm419, %v552, 0.0
  %555 = vadd.xlane.f32.xlu0 %v554
  %v556 = vpop.xlane.xlu0 %555
  %v557 = vmax.f32 %v556, 0.0
  %v558 = vand.u32 2147483647, %v556
  %v559 = vsub.f32 0.0, %v558
  %v560 = vmul.f32 %v559, 1.442695
  %v561 = vpow.pop %v560
  %v562 = vadd.f32 %v561, 1.0
  %v563 = vlog2.pop %v562
  %v564 = vmul.f32 %v563, 0.6931472
  %v565 = vadd.f32 %v557, %v564
  %v566 = vadd.f32 %v565, -1.0
  %567 = vrot.lane.b32.xlu0 %v462, 72
  %v568 = vpop.permute.xlu0 %567
  %v570 = vsel %vm419, %v568, 0.0
  %571 = vadd.xlane.f32.xlu0 %v570
  %v572 = vpop.xlane.xlu0 %571
  %v573 = vadd.f32 %v572, 1e-08
  %v574 = vsub.f32 %v566, %v556
  %v575 = vmul.f32 %v574, %v417
  %v576 = vrcp.pop %v573
  %v577 = vmul.f32 %v573, %v576
  %v578 = vsub.f32 1.0, %v577
  %v579 = vmul.f32 %v576, %v578
  %v580 = vadd.f32 %v576, %v579
  %vm581 = vweird.f32 %v573
  %vm582 = vweird.f32 %v576
  %vm583 = vmor %vm581, %vm582
  %v584 = vsel %vm583, %v576, %v580
  %v585 = vand.u32 2147483647, %v573
  %vm586 = vcmp.eq.f32.partialorder %v585, 8.507059e+37
  %v587 = vand.u32 %v573, 2147483648
  %v588 = vor.u32 1.1754944e-38, %v587
  %v589 = vsel %vm586, %v588, %v584
  %v590 = vmul.f32 %v575, %v589
  %592 = vrot.lane.b32.xlu0 %v590, 96
  %v593 = vpop.permute.xlu0 %592
  %v595 = vadd.f32 %v417, %v593
  %596 = vrot.lane.b32.xlu0 %v517, 56
  %v597 = vpop.permute.xlu0 %596
  %v599 = vmul.f32 %v417, %v597
  %601 = vrot.lane.b32.xlu0 %v599, 72
  %v602 = vpop.permute.xlu0 %601
  %v604 = vsel %vm419, %v602, 0.0
  %605 = vadd.xlane.f32.xlu0 %v604
  %v606 = vpop.xlane.xlu0 %605
  %v607 = vadd.f32 %v606, %v417
  %v608 = vtanh.pop %v607
  %610 = vset.pattern.permute.xlu0 81
  %611 = vperm.xlu0 %610, %v608
  %v612 = vpop.permute.xlu0 %611
  %v614 = vmul.f32 %v595, %v612
  %616 = vrot.lane.b32.xlu0 %v614, 104
  %v617 = vpop.permute.xlu0 %616
  %v619 = vadd.f32 %v517, %v617
  %621 = vrot.lane.b32.xlu0 %v619, 16
  %v622 = vpop.permute.xlu0 %621
  %vm624 = vcmask 195712
  %625 = vst.msk [vmem:[%s15] sm:$0xff] %vm624, %v622
  %v626 = vmul.f32 %v608, %v608
  %v627 = vsub.f32 1.0, %v626
  %629 = vset.pattern.permute.xlu0 81
  %630 = vperm.xlu0 %629, %v627
  %v631 = vpop.permute.xlu0 %630
  %v633 = vmul.f32 %v417, %v631
  %635 = vrot.lane.b32.xlu0 %v595, 32
  %v636 = vpop.permute.xlu0 %635
  %v638 = vmul.f32 %v633, %v636
  %640 = vrot.lane.b32.xlu0 %v638, 72
  %v641 = vpop.permute.xlu0 %640
  %v643 = vsel %vm419, %v641, 0.0
  %644 = vadd.xlane.f32.xlu0 %v643
  %v645 = vpop.xlane.xlu0 %644
  %v646 = vadd.f32 %v645, 1.0
  %v647 = vand.u32 2147483647, %v646
  %v648 = vadd.f32 %v647, 1e-08
  %v649 = vlog2.pop %v648
  %v650 = vmul.f32 %v649, 0.6931472
  %vm651 = vcmask 15368
  %652 = vst.msk [vmem:[%s16] sm:$0xff] %vm651, %v650
  %653 = vrot.lane.b32.xlu0 %v444, 64
  %v654 = vpop.permute.xlu0 %653
  %v656 = vsel %vm419, %v654, 0.0
  %657 = vadd.xlane.f32.xlu0 %v656
  %v658 = vpop.xlane.xlu0 %657
  %v659 = vmax.f32 %v658, 0.0
  %v660 = vand.u32 2147483647, %v658
  %v661 = vsub.f32 0.0, %v660
  %v662 = vmul.f32 %v661, 1.442695
  %v663 = vpow.pop %v662
  %v664 = vadd.f32 %v663, 1.0
  %v665 = vlog2.pop %v664
  %v666 = vmul.f32 %v665, 0.6931472
  %v667 = vadd.f32 %v659, %v666
  %v668 = vadd.f32 %v667, -1.0
  %669 = vrot.lane.b32.xlu0 %v462, 64
  %v670 = vpop.permute.xlu0 %669
  %v672 = vsel %vm419, %v670, 0.0
  %673 = vadd.xlane.f32.xlu0 %v672
  %v674 = vpop.xlane.xlu0 %673
  %v675 = vadd.f32 %v674, 1e-08
  %v676 = vsub.f32 %v668, %v658
  %v677 = vmul.f32 %v676, %v417
  %v678 = vrcp.pop %v675
  %v679 = vmul.f32 %v675, %v678
  %v680 = vsub.f32 1.0, %v679
  %v681 = vmul.f32 %v678, %v680
  %v682 = vadd.f32 %v678, %v681
  %vm683 = vweird.f32 %v675
  %vm684 = vweird.f32 %v678
  %vm685 = vmor %vm683, %vm684
  %v686 = vsel %vm685, %v678, %v682
  %v687 = vand.u32 2147483647, %v675
  %vm688 = vcmp.eq.f32.partialorder %v687, 8.507059e+37
  %v689 = vand.u32 %v675, 2147483648
  %v690 = vor.u32 1.1754944e-38, %v689
  %v691 = vsel %vm688, %v690, %v686
  %v692 = vmul.f32 %v677, %v691
  %694 = vrot.lane.b32.xlu0 %v692, 96
  %v695 = vpop.permute.xlu0 %694
  %v697 = vadd.f32 %v417, %v695
  %698 = vrot.lane.b32.xlu0 %v619, 64
  %v699 = vpop.permute.xlu0 %698
  %v701 = vmul.f32 %v417, %v699
  %703 = vrot.lane.b32.xlu0 %v701, 64
  %v704 = vpop.permute.xlu0 %703
  %v706 = vsel %vm419, %v704, 0.0
  %707 = vadd.xlane.f32.xlu0 %v706
  %v708 = vpop.xlane.xlu0 %707
  %v709 = vadd.f32 %v708, %v417
  %v710 = vtanh.pop %v709
  %712 = vset.pattern.permute.xlu0 82
  %713 = vperm.xlu0 %712, %v710
  %v714 = vpop.permute.xlu0 %713
  %v716 = vmul.f32 %v697, %v714
  %718 = vrot.lane.b32.xlu0 %v716, 96
  %v719 = vpop.permute.xlu0 %718
  %v721 = vadd.f32 %v619, %v719
  %723 = vrot.lane.b32.xlu0 %v721, 24
  %v724 = vpop.permute.xlu0 %723
  %vm726 = vcmask 261312
  %727 = vst.msk [vmem:[%s15] sm:$0xff] %vm726, %v724
  %v728 = vmul.f32 %v710, %v710
  %v729 = vsub.f32 1.0, %v728
  %731 = vset.pattern.permute.xlu0 82
  %732 = vperm.xlu0 %731, %v729
  %v733 = vpop.permute.xlu0 %732
  %v735 = vmul.f32 %v417, %v733
  %737 = vrot.lane.b32.xlu0 %v697, 32
  %v738 = vpop.permute.xlu0 %737
  %v740 = vmul.f32 %v735, %v738
  %742 = vrot.lane.b32.xlu0 %v740, 64
  %v743 = vpop.permute.xlu0 %742
  %v745 = vsel %vm419, %v743, 0.0
  %746 = vadd.xlane.f32.xlu0 %v745
  %v747 = vpop.xlane.xlu0 %746
  %v748 = vadd.f32 %v747, 1.0
  %v749 = vand.u32 2147483647, %v748
  %v750 = vadd.f32 %v749, 1e-08
  %v751 = vlog2.pop %v750
  %v752 = vmul.f32 %v751, 0.6931472
  %vm753 = vcmask 23568
  %754 = vst.msk [vmem:[%s16] sm:$0xff] %vm753, %v752
  %755 = vrot.lane.b32.xlu0 %v444, 56
  %v756 = vpop.permute.xlu0 %755
  %v758 = vsel %vm419, %v756, 0.0
  %759 = vadd.xlane.f32.xlu0 %v758
  %v760 = vpop.xlane.xlu0 %759
  %v761 = vmax.f32 %v760, 0.0
  %v762 = vand.u32 2147483647, %v760
  %v763 = vsub.f32 0.0, %v762
  %v764 = vmul.f32 %v763, 1.442695
  %v765 = vpow.pop %v764
  %v766 = vadd.f32 %v765, 1.0
  %v767 = vlog2.pop %v766
  %v768 = vmul.f32 %v767, 0.6931472
  %v769 = vadd.f32 %v761, %v768
  %v770 = vadd.f32 %v769, -1.0
  %771 = vrot.lane.b32.xlu0 %v462, 56
  %v772 = vpop.permute.xlu0 %771
  %v774 = vsel %vm419, %v772, 0.0
  %775 = vadd.xlane.f32.xlu0 %v774
  %v776 = vpop.xlane.xlu0 %775
  %v777 = vadd.f32 %v776, 1e-08
  %v778 = vsub.f32 %v770, %v760
  %v779 = vmul.f32 %v778, %v417
  %v780 = vrcp.pop %v777
  %v781 = vmul.f32 %v777, %v780
  %v782 = vsub.f32 1.0, %v781
  %v783 = vmul.f32 %v780, %v782
  %v784 = vadd.f32 %v780, %v783
  %vm785 = vweird.f32 %v777
  %vm786 = vweird.f32 %v780
  %vm787 = vmor %vm785, %vm786
  %v788 = vsel %vm787, %v780, %v784
  %v789 = vand.u32 2147483647, %v777
  %vm790 = vcmp.eq.f32.partialorder %v789, 8.507059e+37
  %v791 = vand.u32 %v777, 2147483648
  %v792 = vor.u32 1.1754944e-38, %v791
  %v793 = vsel %vm790, %v792, %v788
  %v794 = vmul.f32 %v779, %v793
  %796 = vrot.lane.b32.xlu0 %v794, 96
  %v797 = vpop.permute.xlu0 %796
  %v799 = vadd.f32 %v417, %v797
  %800 = vrot.lane.b32.xlu0 %v721, 72
  %v801 = vpop.permute.xlu0 %800
  %v803 = vmul.f32 %v417, %v801
  %805 = vrot.lane.b32.xlu0 %v803, 56
  %v806 = vpop.permute.xlu0 %805
  %v808 = vsel %vm419, %v806, 0.0
  %809 = vadd.xlane.f32.xlu0 %v808
  %v810 = vpop.xlane.xlu0 %809
  %v811 = vadd.f32 %v810, %v417
  %v812 = vtanh.pop %v811
  %814 = vset.pattern.permute.xlu0 83
  %815 = vperm.xlu0 %814, %v812
  %v816 = vpop.permute.xlu0 %815
  %v818 = vmul.f32 %v799, %v816
  %820 = vrot.lane.b32.xlu0 %v818, 88
  %v821 = vpop.permute.xlu0 %820
  %v823 = vadd.f32 %v721, %v821
  %825 = vrot.lane.b32.xlu0 %v823, 32
  %v826 = vpop.permute.xlu0 %825
  %vm828 = vcmask 326912
  %829 = vst.msk [vmem:[%s15] sm:$0xff] %vm828, %v826
  %v830 = vmul.f32 %v812, %v812
  %v831 = vsub.f32 1.0, %v830
  %833 = vset.pattern.permute.xlu0 83
  %834 = vperm.xlu0 %833, %v831
  %v835 = vpop.permute.xlu0 %834
  %v837 = vmul.f32 %v417, %v835
  %839 = vrot.lane.b32.xlu0 %v799, 32
  %v840 = vpop.permute.xlu0 %839
  %v842 = vmul.f32 %v837, %v840
  %844 = vrot.lane.b32.xlu0 %v842, 56
  %v845 = vpop.permute.xlu0 %844
  %v847 = vsel %vm419, %v845, 0.0
  %848 = vadd.xlane.f32.xlu0 %v847
  %v849 = vpop.xlane.xlu0 %848
  %v850 = vadd.f32 %v849, 1.0
  %v851 = vand.u32 2147483647, %v850
  %v852 = vadd.f32 %v851, 1e-08
  %v853 = vlog2.pop %v852
  %v854 = vmul.f32 %v853, 0.6931472
  %vm855 = vcmask 31768
  %856 = vst.msk [vmem:[%s16] sm:$0xff] %vm855, %v854
  %v857 = vld [vmem:[%s8] sm:$0xff]
  %v858 = vld [vmem:[%s9] sm:$0x1]
  %v860 = vperm.slane %v858, 0
  %v862 = vsel %vm419, %v823, 0
  %864 = vmatpush.msra.mxu0 0.0
  %865 = vmatpush.msra.mxu0 0.0
  %866 = vmatpush.msra.mxu0 0.0
  %867 = vmatpush.msra.mxu0 0.0
  %868 = vmatpush.msra.mxu0 0.0
  %869 = vmatpush.msra.mxu0 0.0
  %870 = vmatpush.msra.mxu0 0.0
  %871 = vmatpush.msra.mxu0 0.0
  %872 = vmatpush.msra.mxu0 0.0
  %873 = vmatpush.msra.mxu0 0.0
  %874 = vmatpush.msra.mxu0 0.0
  %875 = vmatpush.msra.mxu0 0.0
  %876 = vmatpush.msra.mxu0 0.0
  %877 = vmatpush.msra.mxu0 0.0
  %878 = vmatpush.msra.mxu0 0.0
  %879 = vmatpush.msra.mxu0 %v857
  %880 = vmatmul.f32.gmra.mxu0 %v862
  %v881 = vpop.f32.mrf.mxu0
  %v882 = vadd.f32 %v860, %v881
  %883 = vdwg.mxu0
  %v884 = vmax.f32 %v882, 0.0
  %v885 = vld [vmem:[%s10] sm:$0xff]
  %v886 = vld [vmem:[%s10 + $0x8] sm:$0xff]
  %v887 = vld [vmem:[%s10 + $0x10] sm:$0xff]
  %v888 = vld [vmem:[%s10 + $0x18] sm:$0xff]
  %v889 = vld [vmem:[%s11] sm:$0x1]
  %v891 = vperm.slane %v889, 0
  %v894 = vsel %vm362, %v884, 0
  %896 = vmatpush.msra.mxu0 0.0
  %897 = vmatpush.msra.mxu0 0.0
  %898 = vmatpush.msra.mxu0 0.0
  %899 = vmatpush.msra.mxu0 0.0
  %900 = vmatpush.msra.mxu0 0.0
  %901 = vmatpush.msra.mxu0 0.0
  %902 = vmatpush.msra.mxu0 0.0
  %903 = vmatpush.msra.mxu0 0.0
  %904 = vmatpush.msra.mxu0 0.0
  %905 = vmatpush.msra.mxu0 0.0
  %906 = vmatpush.msra.mxu0 0.0
  %907 = vmatpush.msra.mxu0 0.0
  %908 = vmatpush.msra.mxu0 %v888
  %909 = vmatpush.msra.mxu0 %v887
  %910 = vmatpush.msra.mxu0 %v886
  %911 = vmatpush.msra.mxu0 %v885
  %912 = vmatmul.f32.gmra.mxu0 %v894
  %v913 = vpop.f32.mrf.mxu0
  %v914 = vadd.f32 %v891, %v913
  %915 = vdwg.mxu0
  %v916 = vmax.f32 %v914, 0.0
  %v917 = vld [vmem:[%s12] sm:$0xff]
  %v918 = vld [vmem:[%s12 + $0x8] sm:$0xff]
  %v919 = vld [vmem:[%s12 + $0x10] sm:$0xff]
  %v920 = vld [vmem:[%s12 + $0x18] sm:$0xff]
  %v921 = vld [vmem:[%s12 + $0x20] sm:$0xff]
  %v922 = vld [vmem:[%s12 + $0x28] sm:$0xff]
  %v923 = vld [vmem:[%s12 + $0x30] sm:$0xff]
  %v924 = vld [vmem:[%s12 + $0x38] sm:$0xff]
  %v925 = vld [vmem:[%s12 + $0x40] sm:$0xff]
  %v926 = vld [vmem:[%s12 + $0x48] sm:$0xff]
  %v927 = vld [vmem:[%s12 + $0x50] sm:$0xff]
  %v928 = vld [vmem:[%s12 + $0x58] sm:$0xff]
  %v929 = vld [vmem:[%s12 + $0x60] sm:$0xff]
  %v930 = vld [vmem:[%s12 + $0x68] sm:$0xff]
  %v931 = vld [vmem:[%s12 + $0x70] sm:$0xff]
  %v932 = vld [vmem:[%s12 + $0x78] sm:$0xff]
  %v933 = vld [vmem:[%s12 + $0x80] sm:$0xff]
  %v934 = vld [vmem:[%s12 + $0x88] sm:$0xff]
  %v935 = vld [vmem:[%s12 + $0x90] sm:$0xff]
  %v936 = vld [vmem:[%s12 + $0x98] sm:$0xff]
  %v937 = vld [vmem:[%s12 + $0xa0] sm:$0xff]
  %v938 = vld [vmem:[%s12 + $0xa8] sm:$0xff]
  %v939 = vld [vmem:[%s12 + $0xb0] sm:$0xff]
  %v940 = vld [vmem:[%s12 + $0xb8] sm:$0xff]
  %v941 = vld [vmem:[%s12 + $0xc0] sm:$0xff]
  %v942 = vld [vmem:[%s12 + $0xc8] sm:$0xff]
  %v943 = vld [vmem:[%s12 + $0xd0] sm:$0xff]
  %v944 = vld [vmem:[%s12 + $0xd8] sm:$0xff]
  %v945 = vld [vmem:[%s12 + $0xe0] sm:$0xff]
  %v946 = vld [vmem:[%s12 + $0xe8] sm:$0xff]
  %v947 = vld [vmem:[%s12 + $0xf0] sm:$0xff]
  %v948 = vld [vmem:[%s12 + $0xf8] sm:$0xff]
  %v949 = vld [vmem:[%s13] sm:$0xff]
  %v951 = vperm.slane %v949, 0
  %v952 = vperm.slane %v949, 1
  %v953 = vperm.slane %v949, 2
  %v954 = vperm.slane %v949, 3
  %v955 = vperm.slane %v949, 4
  %v956 = vperm.slane %v949, 5
  %v957 = vperm.slane %v949, 6
  %v958 = vperm.slane %v949, 7
  %v968 = vsel %vm362, %v916, 0
  %970 = vmatpush.msra.mxu0 0.0
  %971 = vmatpush.msra.mxu0 0.0
  %972 = vmatpush.msra.mxu0 0.0
  %973 = vmatpush.msra.mxu0 0.0
  %974 = vmatpush.msra.mxu0 0.0
  %975 = vmatpush.msra.mxu0 0.0
  %976 = vmatpush.msra.mxu0 0.0
  %977 = vmatpush.msra.mxu0 0.0
  %978 = vmatpush.msra.mxu0 0.0
  %979 = vmatpush.msra.mxu0 0.0
  %980 = vmatpush.msra.mxu0 0.0
  %981 = vmatpush.msra.mxu0 0.0
  %982 = vmatpush.msra.mxu0 %v941
  %983 = vmatpush.msra.mxu0 %v933
  %984 = vmatpush.msra.mxu0 %v925
  %985 = vmatpush.msra.mxu0 %v917
  %986 = vmatmul.f32.gmra.mxu0 %v968
  %v987 = vpop.f32.mrf.mxu0
  %v988 = vadd.f32 %v951, %v987
  %989 = vdwg.mxu0
  %990 = vmatpush.msra.mxu0 0.0
  %991 = vmatpush.msra.mxu0 0.0
  %992 = vmatpush.msra.mxu0 0.0
  %993 = vmatpush.msra.mxu0 0.0
  %994 = vmatpush.msra.mxu0 0.0
  %995 = vmatpush.msra.mxu0 0.0
  %996 = vmatpush.msra.mxu0 0.0
  %997 = vmatpush.msra.mxu0 0.0
  %998 = vmatpush.msra.mxu0 0.0
  %999 = vmatpush.msra.mxu0 0.0
  %1000 = vmatpush.msra.mxu0 0.0
  %1001 = vmatpush.msra.mxu0 0.0
  %1002 = vmatpush.msra.mxu0 %v942
  %1003 = vmatpush.msra.mxu0 %v934
  %1004 = vmatpush.msra.mxu0 %v926
  %1005 = vmatpush.msra.mxu0 %v918
  %1006 = vmatmul.f32.gmra.mxu0 %v968
  %v1007 = vpop.f32.mrf.mxu0
  %v1008 = vadd.f32 %v952, %v1007
  %1009 = vdwg.mxu0
  %1010 = vmatpush.msra.mxu0 0.0
  %1011 = vmatpush.msra.mxu0 0.0
  %1012 = vmatpush.msra.mxu0 0.0
  %1013 = vmatpush.msra.mxu0 0.0
  %1014 = vmatpush.msra.mxu0 0.0
  %1015 = vmatpush.msra.mxu0 0.0
  %1016 = vmatpush.msra.mxu0 0.0
  %1017 = vmatpush.msra.mxu0 0.0
  %1018 = vmatpush.msra.mxu0 0.0
  %1019 = vmatpush.msra.mxu0 0.0
  %1020 = vmatpush.msra.mxu0 0.0
  %1021 = vmatpush.msra.mxu0 0.0
  %1022 = vmatpush.msra.mxu0 %v943
  %1023 = vmatpush.msra.mxu0 %v935
  %1024 = vmatpush.msra.mxu0 %v927
  %1025 = vmatpush.msra.mxu0 %v919
  %1026 = vmatmul.f32.gmra.mxu0 %v968
  %v1027 = vpop.f32.mrf.mxu0
  %v1028 = vadd.f32 %v953, %v1027
  %1029 = vdwg.mxu0
  %1030 = vmatpush.msra.mxu0 0.0
  %1031 = vmatpush.msra.mxu0 0.0
  %1032 = vmatpush.msra.mxu0 0.0
  %1033 = vmatpush.msra.mxu0 0.0
  %1034 = vmatpush.msra.mxu0 0.0
  %1035 = vmatpush.msra.mxu0 0.0
  %1036 = vmatpush.msra.mxu0 0.0
  %1037 = vmatpush.msra.mxu0 0.0
  %1038 = vmatpush.msra.mxu0 0.0
  %1039 = vmatpush.msra.mxu0 0.0
  %1040 = vmatpush.msra.mxu0 0.0
  %1041 = vmatpush.msra.mxu0 0.0
  %1042 = vmatpush.msra.mxu0 %v944
  %1043 = vmatpush.msra.mxu0 %v936
  %1044 = vmatpush.msra.mxu0 %v928
  %1045 = vmatpush.msra.mxu0 %v920
  %1046 = vmatmul.f32.gmra.mxu0 %v968
  %v1047 = vpop.f32.mrf.mxu0
  %v1048 = vadd.f32 %v954, %v1047
  %1049 = vdwg.mxu0
  %1050 = vmatpush.msra.mxu0 0.0
  %1051 = vmatpush.msra.mxu0 0.0
  %1052 = vmatpush.msra.mxu0 0.0
  %1053 = vmatpush.msra.mxu0 0.0
  %1054 = vmatpush.msra.mxu0 0.0
  %1055 = vmatpush.msra.mxu0 0.0
  %1056 = vmatpush.msra.mxu0 0.0
  %1057 = vmatpush.msra.mxu0 0.0
  %1058 = vmatpush.msra.mxu0 0.0
  %1059 = vmatpush.msra.mxu0 0.0
  %1060 = vmatpush.msra.mxu0 0.0
  %1061 = vmatpush.msra.mxu0 0.0
  %1062 = vmatpush.msra.mxu0 %v945
  %1063 = vmatpush.msra.mxu0 %v937
  %1064 = vmatpush.msra.mxu0 %v929
  %1065 = vmatpush.msra.mxu0 %v921
  %1066 = vmatmul.f32.gmra.mxu0 %v968
  %v1067 = vpop.f32.mrf.mxu0
  %v1068 = vadd.f32 %v955, %v1067
  %1069 = vdwg.mxu0
  %1070 = vmatpush.msra.mxu0 0.0
  %1071 = vmatpush.msra.mxu0 0.0
  %1072 = vmatpush.msra.mxu0 0.0
  %1073 = vmatpush.msra.mxu0 0.0
  %1074 = vmatpush.msra.mxu0 0.0
  %1075 = vmatpush.msra.mxu0 0.0
  %1076 = vmatpush.msra.mxu0 0.0
  %1077 = vmatpush.msra.mxu0 0.0
  %1078 = vmatpush.msra.mxu0 0.0
  %1079 = vmatpush.msra.mxu0 0.0
  %1080 = vmatpush.msra.mxu0 0.0
  %1081 = vmatpush.msra.mxu0 0.0
  %1082 = vmatpush.msra.mxu0 %v946
  %1083 = vmatpush.msra.mxu0 %v938
  %1084 = vmatpush.msra.mxu0 %v930
  %1085 = vmatpush.msra.mxu0 %v922
  %1086 = vmatmul.f32.gmra.mxu0 %v968
  %v1087 = vpop.f32.mrf.mxu0
  %v1088 = vadd.f32 %v956, %v1087
  %1089 = vdwg.mxu0
  %1090 = vmatpush.msra.mxu0 0.0
  %1091 = vmatpush.msra.mxu0 0.0
  %1092 = vmatpush.msra.mxu0 0.0
  %1093 = vmatpush.msra.mxu0 0.0
  %1094 = vmatpush.msra.mxu0 0.0
  %1095 = vmatpush.msra.mxu0 0.0
  %1096 = vmatpush.msra.mxu0 0.0
  %1097 = vmatpush.msra.mxu0 0.0
  %1098 = vmatpush.msra.mxu0 0.0
  %1099 = vmatpush.msra.mxu0 0.0
  %1100 = vmatpush.msra.mxu0 0.0
  %1101 = vmatpush.msra.mxu0 0.0
  %1102 = vmatpush.msra.mxu0 %v947
  %1103 = vmatpush.msra.mxu0 %v939
  %1104 = vmatpush.msra.mxu0 %v931
  %1105 = vmatpush.msra.mxu0 %v923
  %1106 = vmatmul.f32.gmra.mxu0 %v968
  %v1107 = vpop.f32.mrf.mxu0
  %v1108 = vadd.f32 %v957, %v1107
  %1109 = vdwg.mxu0
  %1110 = vmatpush.msra.mxu0 0.0
  %1111 = vmatpush.msra.mxu0 0.0
  %1112 = vmatpush.msra.mxu0 0.0
  %1113 = vmatpush.msra.mxu0 0.0
  %1114 = vmatpush.msra.mxu0 0.0
  %1115 = vmatpush.msra.mxu0 0.0
  %1116 = vmatpush.msra.mxu0 0.0
  %1117 = vmatpush.msra.mxu0 0.0
  %1118 = vmatpush.msra.mxu0 0.0
  %1119 = vmatpush.msra.mxu0 0.0
  %1120 = vmatpush.msra.mxu0 0.0
  %1121 = vmatpush.msra.mxu0 0.0
  %1122 = vmatpush.msra.mxu0 %v948
  %1123 = vmatpush.msra.mxu0 %v940
  %1124 = vmatpush.msra.mxu0 %v932
  %1125 = vmatpush.msra.mxu0 %v924
  %1126 = vmatmul.f32.gmra.mxu0 %v968
  %v1127 = vpop.f32.mrf.mxu0
  %v1128 = vadd.f32 %v958, %v1127
  %1129 = vdwg.mxu0
  %v1130 = vsub.f32 0.0, %v988
  %v1131 = vsub.f32 0.0, %v1008
  %v1132 = vsub.f32 0.0, %v1028
  %v1133 = vsub.f32 0.0, %v1048
  %v1134 = vsub.f32 0.0, %v1068
  %v1135 = vsub.f32 0.0, %v1088
  %v1136 = vsub.f32 0.0, %v1108
  %v1137 = vsub.f32 0.0, %v1128
  %v1138 = vmul.f32 %v1130, 1.442695
  %v1139 = vpow.pop %v1138
  %v1140 = vmul.f32 %v1131, 1.442695
  %v1141 = vpow.pop %v1140
  %v1142 = vmul.f32 %v1132, 1.442695
  %v1143 = vpow.pop %v1142
  %v1144 = vmul.f32 %v1133, 1.442695
  %v1145 = vpow.pop %v1144
  %v1146 = vmul.f32 %v1134, 1.442695
  %v1147 = vpow.pop %v1146
  %v1148 = vmul.f32 %v1135, 1.442695
  %v1149 = vpow.pop %v1148
  %v1150 = vmul.f32 %v1136, 1.442695
  %v1151 = vpow.pop %v1150
  %v1152 = vmul.f32 %v1137, 1.442695
  %v1153 = vpow.pop %v1152
  %v1154 = vadd.f32 %v1139, 1.0
  %v1155 = vadd.f32 %v1141, 1.0
  %v1156 = vadd.f32 %v1143, 1.0
  %v1157 = vadd.f32 %v1145, 1.0
  %v1158 = vadd.f32 %v1147, 1.0
  %v1159 = vadd.f32 %v1149, 1.0
  %v1160 = vadd.f32 %v1151, 1.0
  %v1161 = vadd.f32 %v1153, 1.0
  %v1162 = vrcp.pop %v1154
  %v1163 = vrcp.pop %v1155
  %v1164 = vrcp.pop %v1156
  %v1165 = vrcp.pop %v1157
  %v1166 = vrcp.pop %v1158
  %v1167 = vrcp.pop %v1159
  %v1168 = vrcp.pop %v1160
  %v1169 = vrcp.pop %v1161
  %1170 = vst [vmem:[%s14] sm:$0xff] %v1162
  %1171 = vst [vmem:[%s14 + $0x8] sm:$0xff] %v1163
  %1172 = vst [vmem:[%s14 + $0x10] sm:$0xff] %v1164
  %1173 = vst [vmem:[%s14 + $0x18] sm:$0xff] %v1165
  %1174 = vst [vmem:[%s14 + $0x20] sm:$0xff] %v1166
  %1175 = vst [vmem:[%s14 + $0x28] sm:$0xff] %v1167
  %1176 = vst [vmem:[%s14 + $0x30] sm:$0xff] %v1168
  %1177 = vst [vmem:[%s14 + $0x38] sm:$0xff] %v1169
  // Predicated region
  $region58: #{planar_vae_forward.1} parent=0 // pred_check
    _
  $region59: #{planar_vae_forward.1} parent=0 // pred_check_branch
    %1179 = sbr.rel (0) target = $region61
  $region60: #{planar_vae_forward.1} parent=0 // pred_region
    _
  $region61: #{planar_vae_forward.1} parent=0 // pred_fallthru
    _
  // Predicated region
  $region62: #{planar_vae_forward.1} parent=0 // pred_check
    _
  $region63: #{planar_vae_forward.1} parent=0 // pred_check_branch
    %1181 = sbr.rel (0) target = $region65
  $region64: #{planar_vae_forward.1} parent=0 // pred_region
    _
  $region65: #{planar_vae_forward.1} parent=0 // pred_fallthru
    _
  // Predicated region
  $region66: #{planar_vae_forward.1} parent=0 // pred_check
    _
  $region67: #{planar_vae_forward.1} parent=0 // pred_check_branch
    %1183 = sbr.rel (0) target = $region69
  $region68: #{planar_vae_forward.1} parent=0 // pred_region
    _
  $region69: #{planar_vae_forward.1} parent=0 // pred_fallthru
    _
  // Predicated region
  $region70: #{planar_vae_forward.1} parent=0 // pred_check
    _
  $region71: #{planar_vae_forward.1} parent=0 // pred_check_branch
    %1185 = sbr.rel (0) target = $region73
  $region72: #{planar_vae_forward.1} parent=0 // pred_region
    _
  $region73: #{planar_vae_forward.1} parent=0 // pred_fallthru
    _
  // Predicated region
  $region74: #{planar_vae_forward.1} parent=0 // pred_check
    _
  $region75: #{planar_vae_forward.1} parent=0 // pred_check_branch
    %1187 = sbr.rel (0) target = $region77
  $region76: #{planar_vae_forward.1} parent=0 // pred_region
    _
  $region77: #{planar_vae_forward.1} parent=0 // pred_fallthru
    _
  // Predicated region
  $region78: #{planar_vae_forward.1} parent=0 // pred_check
    _
  $region79: #{planar_vae_forward.1} parent=0 // pred_check_branch
    %1189 = sbr.rel (0) target = $region81
  $region80: #{planar_vae_forward.1} parent=0 // pred_region
    _
  $region81: #{planar_vae_forward.1} parent=0 // pred_fallthru
    _
  // Predicated region
  $region82: #{planar_vae_forward.1} parent=0 // pred_check
    _
  $region83: #{planar_vae_forward.1} parent=0 // pred_check_branch
    %1191 = sbr.rel (0) target = $region85
  $region84: #{planar_vae_forward.1} parent=0 // pred_region
    _
  $region85: #{planar_vae_forward.1} parent=0 // pred_fallthru
    _
  // Predicated region
  $region86: #{planar_vae_forward.1} parent=0 // pred_check
    _
  $region87: #{planar_vae_forward.1} parent=0 // pred_check_branch
    %1193 = sbr.rel (0) target = $region89
  $region88: #{planar_vae_forward.1} parent=0 // pred_region
    _
  $region89: #{planar_vae_forward.1} parent=0 // pred_fallthru
    _
  // Predicated region
  $region90: #{planar_vae_forward.1} parent=0 // pred_check
    _
  $region91: #{planar_vae_forward.1} parent=0 // pred_check_branch
    %1195 = sbr.rel (0) target = $region93
  $region92: #{planar_vae_forward.1} parent=0 // pred_region
    _
  $region93: #{planar_vae_forward.1} parent=0 // pred_fallthru
    _
  // Predicated region
  $region94: #{planar_vae_forward.1} parent=0 // pred_check
    _
  $region95: #{planar_vae_forward.1} parent=0 // pred_check_branch
    %1197 = sbr.rel (0) target = $region97
  $region96: #{planar_vae_forward.1} parent=0 // pred_region
    _
  $region97: #{planar_vae_forward.1} parent=0 // pred_fallthru
    _
  // Predicated region
  $region98: #{planar_vae_forward.1} parent=0 // pred_check
    _
  $region99: #{planar_vae_forward.1} parent=0 // pred_check_branch
    %1199 = sbr.rel (0) target = $region101
  $region100: #{planar_vae_forward.1} parent=0 // pred_region
    _
  $region101: #{planar_vae_forward.1} parent=0 // pred_fallthru
    _
  // Predicated region
  $region102: #{planar_vae_forward.1} parent=0 // pred_check
    _
  $region103: #{planar_vae_forward.1} parent=0 // pred_check_branch
    %1201 = sbr.rel (0) target = $region105
  $region104: #{planar_vae_forward.1} parent=0 // pred_region
    _
  $region105: #{planar_vae_forward.1} parent=0 // pred_fallthru
    _

</llo_original>
